<compile_context>
chip_gen: v6e
topology: v6e:2x2x1
jax: 0.10.0
libtpu: 0.0.40
codegen_flags: <defaults>
</compile_context>

<pallas_src>
import functools

import numpy as np
import jax
import jax.numpy as jnp
from jax import lax
from jax.experimental import pallas as pl
from jax.experimental.pallas import tpu as pltpu

BN_EPS = 1e-5


def _ceil8(n):
    return (n + 7) // 8 * 8


# ----------------------------------------------------------------------------
# Pallas kernel: out(N, M) = W(N, K) @ patches(K, M) + bias (+ residual) -> act
# ----------------------------------------------------------------------------
def _fused_kernel(act, has_res, w_ref, p_ref, b_ref, *rest):
    if has_res:
        r_ref, o_ref = rest
    else:
        (o_ref,) = rest
    acc = jnp.dot(w_ref[...], p_ref[...], preferred_element_type=jnp.float32)
    acc = acc + b_ref[...]                       # folded eval-mode BN bias (scale is in W)
    if has_res:
        acc = acc + r_ref[...]
    if act == "relu":
        acc = jnp.maximum(acc, 0.0)
    elif act == "tanh":
        acc = jnp.tanh(acc)
    o_ref[...] = acc.astype(o_ref.dtype)


def fused_matmul_bias_act(w_mat, patches, bias, residual=None, act="relu"):
    """w_mat: (Np, Kp) f32, patches: (Kp, M) f32, bias: (Np,) f32, residual: (Np, M) f32."""
    Np, Kp = w_mat.shape
    M = patches.shape[1]

    w_bf = w_mat.astype(jnp.bfloat16)
    p_bf = patches.astype(jnp.bfloat16)
    bias2 = bias.reshape(Np, 1).astype(jnp.float32)

    # At most two M tiles (each a multiple of 128 lanes): grid=(2,) lets both v7x
    # TensorCores work; otherwise one full-extent block (tiny working set, fixed
    # per-grid-step overhead dominates).
    if M % 256 == 0:
        TM = M // 2
    else:
        TM = M
    grid = (M // TM,)

    in_specs = [
        pl.BlockSpec((Np, Kp), lambda i: (0, 0)),   # scale-folded weights (resident)
        pl.BlockSpec((Kp, TM), lambda i: (0, i)),   # im2col patches (lane-dense)
        pl.BlockSpec((Np, 1), lambda i: (0, 0)),    # folded BN bias
    ]
    args = [w_bf, p_bf, bias2]
    if residual is not None:
        in_specs.append(pl.BlockSpec((Np, TM), lambda i: (0, i)))
        args.append(residual.astype(jnp.float32))

    kernel = functools.partial(_fused_kernel, act, residual is not None)
    return pl.pallas_call(
        kernel,
        out_shape=jax.ShapeDtypeStruct((Np, M), jnp.float32),
        grid=grid,
        in_specs=in_specs,
        out_specs=pl.BlockSpec((Np, TM), lambda i: (0, i)),
        compiler_params=pltpu.CompilerParams(dimension_semantics=("parallel",)),
    )(*args)


# ----------------------------------------------------------------------------
# JAX glue: transposed im2col, weight repacking, BN folding, sub-pixel deconv
# ----------------------------------------------------------------------------
def im2col_cbhw(x, kh, kw, stride, pad):
    """x: (C, B, H, W) -> patches (kh*kw*C, B*oh*ow), K order = (tap_i, tap_j, c)."""
    C, B, H, W = x.shape
    if pad:
        x = jnp.pad(x, ((0, 0), (0, 0), (pad, pad), (pad, pad)))
    Hp, Wp = H + 2 * pad, W + 2 * pad
    oh = (Hp - kh) // stride + 1
    ow = (Wp - kw) // stride + 1
    taps = []
    for i in range(kh):
        for j in range(kw):
            taps.append(x[:, :, i:i + (oh - 1) * stride + 1:stride,
                             j:j + (ow - 1) * stride + 1:stride])
    p = jnp.stack(taps, axis=0)                       # (kh*kw, C, B, oh, ow)
    return p.reshape(kh * kw * C, B * oh * ow), (oh, ow)


def _fold_bn(bn_params, out_ch):
    if bn_params is None:
        return jnp.ones((out_ch,), jnp.float32), jnp.zeros((out_ch,), jnp.float32)
    gamma, beta, mean, var = bn_params
    scale = gamma / jnp.sqrt(var + BN_EPS)
    bias = beta - mean * scale
    return scale, bias


def conv_layer(h_cbhw, w_oihw, bn_params, stride, pad, act, residual=None):
    """h: (C, B, H, W). Conv2d(stride, pad, bias=False) [+BN] [+residual] + activation.

    Returns (O, B, oh, ow)."""
    C, B, H, W = h_cbhw.shape
    O, I, kh, kw = w_oihw.shape
    patches, (oh, ow) = im2col_cbhw(h_cbhw, kh, kw, stride, pad)   # (K, M)
    K, M = patches.shape

    # Weight -> (O, K) matching the K ordering (tap, c); fold BN scale into rows.
    w_mat = jnp.transpose(w_oihw, (0, 2, 3, 1)).reshape(O, kh * kw * I)
    scale, bias = _fold_bn(bn_params, O)
    w_mat = w_mat * scale[:, None]

    # Pad K and N to multiples of 8 (sublane alignment); zero pads are exact.
    Kp, Np = _ceil8(K), _ceil8(O)
    if Kp > K:
        patches = jnp.pad(patches, ((0, Kp - K), (0, 0)))
        w_mat = jnp.pad(w_mat, ((0, 0), (0, Kp - K)))
    if Np > O:
        w_mat = jnp.pad(w_mat, ((0, Np - O), (0, 0)))
        bias = jnp.pad(bias, (0, Np - O))

    res_flat = None
    if residual is not None:
        res_flat = residual.reshape(residual.shape[0], -1)          # (O, M)
        if Np > O:
            res_flat = jnp.pad(res_flat, ((0, Np - O), (0, 0)))

    out = fused_matmul_bias_act(w_mat, patches, bias, res_flat, act)  # (Np, M)
    return out[:O].reshape(O, B, oh, ow)


def _deconv_subpixel_weight(wt_iokk):
    """ConvTranspose2d(k=4, s=2, p=1) weight (I, O, 4, 4) -> equivalent 3x3 conv weight
    (4*O, I, 3, 3) over the *un-dilated* input; output phase-channel order is (a, b, o)
    with y[o, n, 2r+a, 2c+b] = conv3x3_out[(a*2+b)*O + o, n, r, c]."""
    I, O, kh, kw = wt_iokk.shape
    w_oikk = jnp.transpose(wt_iokk, (1, 0, 2, 3))     # (O, I, 4, 4)
    zero = jnp.zeros((O, I), wt_iokk.dtype)
    phases = []
    for a in range(2):
        for b in range(2):
            rows = []
            for u in range(3):
                cols = []
                for v in range(3):
                    i = a + 3 - 2 * u
                    j = b + 3 - 2 * v
                    if 0 <= i < kh and 0 <= j < kw:
                        cols.append(w_oikk[:, :, i, j])
                    else:
                        cols.append(zero)
                rows.append(jnp.stack(cols, axis=-1))   # (O, I, 3)
            phases.append(jnp.stack(rows, axis=-2))     # (O, I, 3, 3)
    w3 = jnp.stack(phases, axis=0)                      # (4, O, I, 3, 3)
    return w3.reshape(4 * O, I, 3, 3)


def deconv_layer(h_cbhw, wt_iokk, bn_params, act):
    """ConvTranspose2d(k=4, s=2, p=1, bias=False) [+BN] + act via the sub-pixel trick:
    one 3x3/stride-1/pad-1 conv with 4*O phase channels + depth-to-space interleave."""
    I, O, kh, kw = wt_iokk.shape
    w3 = _deconv_subpixel_weight(wt_iokk)                       # (4*O, I, 3, 3)
    bn4 = None
    if bn_params is not None:
        bn4 = tuple(jnp.tile(p, 4) for p in bn_params)          # per phase-channel
    y = conv_layer(h_cbhw, w3, bn4, 1, 1, act)                  # (4*O, B, H, W)
    _, B, H, W = y.shape
    y = y.reshape(2, 2, O, B, H, W)                             # (a, b, o, n, r, c)
    y = jnp.transpose(y, (2, 3, 4, 0, 5, 1))                    # (o, n, r, a, c, b)
    return y.reshape(O, B, 2 * H, 2 * W)


# ----------------------------------------------------------------------------
# CycleGenerator forward (Pallas) and a pure-XLA reference
# ----------------------------------------------------------------------------
def cycle_generator_forward(x_nchw, P):
    h = jnp.transpose(x_nchw, (1, 0, 2, 3))                       # NCHW -> CBHW
    h = conv_layer(h, P["w1"], P["bn1"], 2, 1, "relu")            # conv1 + BN + ReLU
    h = conv_layer(h, P["w2"], P["bn2"], 2, 1, "relu")            # conv2 + BN + ReLU
    h = conv_layer(h, P["wr"], P["bnr"], 1, 1, "relu", residual=h)  # ResnetBlock + ReLU
    h = deconv_layer(h, P["wd1"], P["bnd1"], "relu")              # deconv1 + BN + ReLU
    h = deconv_layer(h, P["wd2"], None, "tanh")                   # deconv2 + tanh
    return jnp.transpose(h, (1, 0, 2, 3))                         # CBHW -> NCHW


def ref_forward(x, P):
    dn = ("NCHW", "OIHW", "NCHW")

    def conv2d(x, w, stride, pad):
        return lax.conv_general_dilated(x, w, (stride, stride),
                                        ((pad, pad), (pad, pad)),
                                        dimension_numbers=dn)

    def deconv2d(x, wt, stride, pad):
        k = wt.shape[2]
        w = jnp.flip(jnp.transpose(wt, (1, 0, 2, 3)), axis=(2, 3))
        return lax.conv_general_dilated(x, w, (1, 1),
                                        ((k - 1 - pad, k - 1 - pad),) * 2,
                                        lhs_dilation=(stride, stride),
                                        dimension_numbers=dn)

    def bn(x, p):
        g, b, m, v = (a[None, :, None, None] for a in p)
        return (x - m) / jnp.sqrt(v + BN_EPS) * g + b

    h = jax.nn.relu(bn(conv2d(x, P["w1"], 2, 1), P["bn1"]))
    h = jax.nn.relu(bn(conv2d(h, P["w2"], 2, 1), P["bn2"]))
    h = jax.nn.relu(h + bn(conv2d(h, P["wr"], 1, 1), P["bnr"]))
    h = jax.nn.relu(bn(deconv2d(h, P["wd1"], 2, 1), P["bnd1"]))
    h = jnp.tanh(deconv2d(h, P["wd2"], 2, 1))
    return h


# ----------------------------------------------------------------------------
# Deterministic parameter init (shapes per CycleGenerator.__init__)
# ----------------------------------------------------------------------------
def init_params(key, conv_dim=8):
    ks = jax.random.split(key, 9)

    def w(k, o, i, ksz):                      # Conv2d weight (O, I, K, K), bias=False
        return jax.random.normal(k, (o, i, ksz, ksz), jnp.float32) * jnp.sqrt(2.0 / (i * ksz * ksz))

    def wt(k, i, o, ksz):                     # ConvTranspose2d weight (I, O, K, K)
        return jax.random.normal(k, (i, o, ksz, ksz), jnp.float32) * jnp.sqrt(2.0 / (i * ksz * ksz))

    def bn(k, c):                             # (gamma, beta, running_mean, running_var)
        k1, k2, k3, k4 = jax.random.split(k, 4)
        return (1.0 + 0.1 * jax.random.normal(k1, (c,), jnp.float32),
                0.1 * jax.random.normal(k2, (c,), jnp.float32),
                0.1 * jax.random.normal(k3, (c,), jnp.float32),
                1.0 + 0.1 * jax.random.uniform(k4, (c,), jnp.float32))

    cd = conv_dim
    return dict(
        w1=w(ks[0], cd, 3, 3),          bn1=bn(ks[1], cd),
        w2=w(ks[2], cd * 2, cd, 3),     bn2=bn(ks[3], cd * 2),
        wr=w(ks[4], cd * 2, cd * 2, 3), bnr=bn(ks[5], cd * 2),
        wd1=wt(ks[6], cd * 2, cd, 4),   bnd1=bn(ks[7], cd),
        wd2=wt(ks[8], cd, 3, 4),
    )


if __name__ == "__main__":
    key = jax.random.PRNGKey(0)
    kx, kp = jax.random.split(key)
    x = jax.random.normal(kx, (2, 3, 32, 32), jnp.float32)   # BS x 3 x 32 x 32
    params = init_params(kp, conv_dim=8)

    out = jax.jit(cycle_generator_forward)(x, params)
    out = jax.block_until_ready(out)
    assert out.shape == (2, 3, 32, 32), out.shape

    ref = jax.block_until_ready(jax.jit(ref_forward)(x, params))
    # Tolerance accounts for bf16 matmul operands (f32 accumulation) vs the f32 reference.
    np.testing.assert_allclose(np.asarray(out), np.asarray(ref), rtol=2e-2, atol=2e-2)

    print("KERNEL_OK")
</pallas_src>

<mosaic_0001>
module attributes {stable_mosaic.version = 11 : i64} {
  func.func @_fused_kernel(%arg0: i32, %arg1: memref<8x32xbf16, #tpu.memory_space<vmem>>, %arg2: memref<32x256xbf16, #tpu.memory_space<vmem>>, %arg3: memref<8x1xf32, #tpu.memory_space<vmem>>, %arg4: memref<8x256xf32, #tpu.memory_space<vmem>>) attributes {dimension_semantics = [#tpu.dimension_semantics<parallel>], iteration_bounds = array<i64: 2>, scalar_prefetch = 0 : i64, scratch_operands = 0 : i64, tpu.core_type = #tpu.core_type<tc>, window_params = [{pipeline_mode = #tpu.pipeline_mode<synchronous>, transform_indices = @transform_0, window_bounds = array<i64: 8, 32>}, {transform_indices = @transform_1, window_bounds = array<i64: 32, 256>}, {pipeline_mode = #tpu.pipeline_mode<synchronous>, transform_indices = @transform_2, window_bounds = array<i64: 8, 1>}, {transform_indices = @transform_3, window_bounds = array<i64: 8, 256>}]} {
    %c0 = arith.constant 0 : index
    %c0_0 = arith.constant 0 : index
    %0 = vector.load %arg1[%c0, %c0_0] : memref<8x32xbf16, #tpu.memory_space<vmem>>, vector<8x32xbf16>
    %c0_1 = arith.constant 0 : index
    %c0_2 = arith.constant 0 : index
    %1 = vector.load %arg2[%c0_1, %c0_2] : memref<32x256xbf16, #tpu.memory_space<vmem>>, vector<32x256xbf16>
    %cst = arith.constant dense<0.000000e+00> : vector<8x256xf32>
    %2 = tpu.matmul %0, %1, %cst {dimension_numbers = #tpu.dot_dimension_numbers<[1], [0], [0], [1], [0, 0, 1, 1], [], []>} : vector<8x32xbf16>, vector<32x256xbf16>, vector<8x256xf32> -> vector<8x256xf32>
    %c0_3 = arith.constant 0 : index
    %c0_4 = arith.constant 0 : index
    %3 = vector.load %arg3[%c0_3, %c0_4] : memref<8x1xf32, #tpu.memory_space<vmem>>, vector<8x1xf32>
    %4 = vector.broadcast %3 : vector<8x1xf32> to vector<8x256xf32>
    %5 = arith.addf %2, %4 : vector<8x256xf32>
    %cst_5 = arith.constant 0.000000e+00 : f32
    %6 = vector.broadcast %cst_5 : f32 to vector<8x256xf32>
    %7 = arith.maximumf %5, %6 : vector<8x256xf32>
    %c0_6 = arith.constant 0 : index
    %c0_7 = arith.constant 0 : index
    %8 = vector.load %arg4[%c0_6, %c0_7] : memref<8x256xf32, #tpu.memory_space<vmem>>, vector<8x256xf32>
    tpu.vector_store %arg4[%c0_6, %c0_7], %7 {strides = array<i32>} : memref<8x256xf32, #tpu.memory_space<vmem>>, vector<8x256xf32>,
    return
  }
  func.func @transform_0(%arg0: i32) -> (i32, i32) {
    %c0_i32 = arith.constant 0 : i32
    %c0_i32_0 = arith.constant 0 : i32
    %c0_i32_1 = arith.constant 0 : i32
    return %c0_i32, %c0_i32_0 : i32, i32
  }
  func.func @transform_1(%arg0: i32) -> (i32, i32) {
    %c0_i32 = arith.constant 0 : i32
    %c0_i32_0 = arith.constant 0 : i32
    return %c0_i32, %arg0 : i32, i32
  }
  func.func @transform_2(%arg0: i32) -> (i32, i32) {
    %c0_i32 = arith.constant 0 : i32
    %c0_i32_0 = arith.constant 0 : i32
    %c0_i32_1 = arith.constant 0 : i32
    return %c0_i32, %c0_i32_0 : i32, i32
  }
  func.func @transform_3(%arg0: i32) -> (i32, i32) {
    %c0_i32 = arith.constant 0 : i32
    %c0_i32_0 = arith.constant 0 : i32
    return %c0_i32, %arg0 : i32, i32
  }
}

module attributes {stable_mosaic.version = 11 : i64} {
  func.func @_fused_kernel(%arg0: i32, %arg1: memref<16x72xbf16, #tpu.memory_space<vmem>>, %arg2: memref<72x128xbf16, #tpu.memory_space<vmem>>, %arg3: memref<16x1xf32, #tpu.memory_space<vmem>>, %arg4: memref<16x128xf32, #tpu.memory_space<vmem>>) attributes {dimension_semantics = [#tpu.dimension_semantics<parallel>], iteration_bounds = array<i64: 1>, scalar_prefetch = 0 : i64, scratch_operands = 0 : i64, tpu.core_type = #tpu.core_type<tc>, window_params = [{pipeline_mode = #tpu.pipeline_mode<synchronous>, transform_indices = @transform_0, window_bounds = array<i64: 16, 72>}, {transform_indices = @transform_1, window_bounds = array<i64: 72, 128>}, {pipeline_mode = #tpu.pipeline_mode<synchronous>, transform_indices = @transform_2, window_bounds = array<i64: 16, 1>}, {transform_indices = @transform_3, window_bounds = array<i64: 16, 128>}]} {
    %c0 = arith.constant 0 : index
    %c0_0 = arith.constant 0 : index
    %0 = vector.load %arg1[%c0, %c0_0] : memref<16x72xbf16, #tpu.memory_space<vmem>>, vector<16x72xbf16>
    %c0_1 = arith.constant 0 : index
    %c0_2 = arith.constant 0 : index
    %1 = vector.load %arg2[%c0_1, %c0_2] : memref<72x128xbf16, #tpu.memory_space<vmem>>, vector<72x128xbf16>
    %cst = arith.constant dense<0.000000e+00> : vector<16x128xf32>
    %2 = tpu.matmul %0, %1, %cst {dimension_numbers = #tpu.dot_dimension_numbers<[1], [0], [0], [1], [0, 0, 1, 1], [], []>} : vector<16x72xbf16>, vector<72x128xbf16>, vector<16x128xf32> -> vector<16x128xf32>
    %c0_3 = arith.constant 0 : index
    %c0_4 = arith.constant 0 : index
    %3 = vector.load %arg3[%c0_3, %c0_4] : memref<16x1xf32, #tpu.memory_space<vmem>>, vector<16x1xf32>
    %4 = vector.broadcast %3 : vector<16x1xf32> to vector<16x128xf32>
    %5 = arith.addf %2, %4 : vector<16x128xf32>
    %cst_5 = arith.constant 0.000000e+00 : f32
    %6 = vector.broadcast %cst_5 : f32 to vector<16x128xf32>
    %7 = arith.maximumf %5, %6 : vector<16x128xf32>
    %c0_6 = arith.constant 0 : index
    %c0_7 = arith.constant 0 : index
    %8 = vector.load %arg4[%c0_6, %c0_7] : memref<16x128xf32, #tpu.memory_space<vmem>>, vector<16x128xf32>
    tpu.vector_store %arg4[%c0_6, %c0_7], %7 {strides = array<i32>} : memref<16x128xf32, #tpu.memory_space<vmem>>, vector<16x128xf32>,
    return
  }
  func.func @transform_0(%arg0: i32) -> (i32, i32) {
    %c0_i32 = arith.constant 0 : i32
    %c0_i32_0 = arith.constant 0 : i32
    %c0_i32_1 = arith.constant 0 : i32
    return %c0_i32, %c0_i32_0 : i32, i32
  }
  func.func @transform_1(%arg0: i32) -> (i32, i32) {
    %c0_i32 = arith.constant 0 : i32
    %c0_i32_0 = arith.constant 0 : i32
    return %c0_i32, %arg0 : i32, i32
  }
  func.func @transform_2(%arg0: i32) -> (i32, i32) {
    %c0_i32 = arith.constant 0 : i32
    %c0_i32_0 = arith.constant 0 : i32
    %c0_i32_1 = arith.constant 0 : i32
    return %c0_i32, %c0_i32_0 : i32, i32
  }
  func.func @transform_3(%arg0: i32) -> (i32, i32) {
    %c0_i32 = arith.constant 0 : i32
    %c0_i32_0 = arith.constant 0 : i32
    return %c0_i32, %arg0 : i32, i32
  }
}

module attributes {stable_mosaic.version = 11 : i64} {
  func.func @_fused_kernel(%arg0: i32, %arg1: memref<16x144xbf16, #tpu.memory_space<vmem>>, %arg2: memref<144x128xbf16, #tpu.memory_space<vmem>>, %arg3: memref<16x1xf32, #tpu.memory_space<vmem>>, %arg4: memref<16x128xf32, #tpu.memory_space<vmem>>, %arg5: memref<16x128xf32, #tpu.memory_space<vmem>>) attributes {dimension_semantics = [#tpu.dimension_semantics<parallel>], iteration_bounds = array<i64: 1>, scalar_prefetch = 0 : i64, scratch_operands = 0 : i64, tpu.core_type = #tpu.core_type<tc>, window_params = [{pipeline_mode = #tpu.pipeline_mode<synchronous>, transform_indices = @transform_0, window_bounds = array<i64: 16, 144>}, {transform_indices = @transform_1, window_bounds = array<i64: 144, 128>}, {pipeline_mode = #tpu.pipeline_mode<synchronous>, transform_indices = @transform_2, window_bounds = array<i64: 16, 1>}, {transform_indices = @transform_3, window_bounds = array<i64: 16, 128>}, {transform_indices = @transform_4, window_bounds = array<i64: 16, 128>}]} {
    %c0 = arith.constant 0 : index
    %c0_0 = arith.constant 0 : index
    %0 = vector.load %arg1[%c0, %c0_0] : memref<16x144xbf16, #tpu.memory_space<vmem>>, vector<16x144xbf16>
    %c0_1 = arith.constant 0 : index
    %c0_2 = arith.constant 0 : index
    %1 = vector.load %arg2[%c0_1, %c0_2] : memref<144x128xbf16, #tpu.memory_space<vmem>>, vector<144x128xbf16>
    %cst = arith.constant dense<0.000000e+00> : vector<16x128xf32>
    %2 = tpu.matmul %0, %1, %cst {dimension_numbers = #tpu.dot_dimension_numbers<[1], [0], [0], [1], [0, 0, 1, 1], [], []>} : vector<16x144xbf16>, vector<144x128xbf16>, vector<16x128xf32> -> vector<16x128xf32>
    %c0_3 = arith.constant 0 : index
    %c0_4 = arith.constant 0 : index
    %3 = vector.load %arg3[%c0_3, %c0_4] : memref<16x1xf32, #tpu.memory_space<vmem>>, vector<16x1xf32>
    %4 = vector.broadcast %3 : vector<16x1xf32> to vector<16x128xf32>
    %5 = arith.addf %2, %4 : vector<16x128xf32>
    %c0_5 = arith.constant 0 : index
    %c0_6 = arith.constant 0 : index
    %6 = vector.load %arg4[%c0_5, %c0_6] : memref<16x128xf32, #tpu.memory_space<vmem>>, vector<16x128xf32>
    %7 = arith.addf %5, %6 : vector<16x128xf32>
    %cst_7 = arith.constant 0.000000e+00 : f32
    %8 = vector.broadcast %cst_7 : f32 to vector<16x128xf32>
    %9 = arith.maximumf %7, %8 : vector<16x128xf32>
    %c0_8 = arith.constant 0 : index
    %c0_9 = arith.constant 0 : index
    %10 = vector.load %arg5[%c0_8, %c0_9] : memref<16x128xf32, #tpu.memory_space<vmem>>, vector<16x128xf32>
    tpu.vector_store %arg5[%c0_8, %c0_9], %9 {strides = array<i32>} : memref<16x128xf32, #tpu.memory_space<vmem>>, vector<16x128xf32>,
    return
  }
  func.func @transform_0(%arg0: i32) -> (i32, i32) {
    %c0_i32 = arith.constant 0 : i32
    %c0_i32_0 = arith.constant 0 : i32
    %c0_i32_1 = arith.constant 0 : i32
    return %c0_i32, %c0_i32_0 : i32, i32
  }
  func.func @transform_1(%arg0: i32) -> (i32, i32) {
    %c0_i32 = arith.constant 0 : i32
    %c0_i32_0 = arith.constant 0 : i32
    return %c0_i32, %arg0 : i32, i32
  }
  func.func @transform_2(%arg0: i32) -> (i32, i32) {
    %c0_i32 = arith.constant 0 : i32
    %c0_i32_0 = arith.constant 0 : i32
    %c0_i32_1 = arith.constant 0 : i32
    return %c0_i32, %c0_i32_0 : i32, i32
  }
  func.func @transform_3(%arg0: i32) -> (i32, i32) {
    %c0_i32 = arith.constant 0 : i32
    %c0_i32_0 = arith.constant 0 : i32
    return %c0_i32, %arg0 : i32, i32
  }
  func.func @transform_4(%arg0: i32) -> (i32, i32) {
    %c0_i32 = arith.constant 0 : i32
    %c0_i32_0 = arith.constant 0 : i32
    return %c0_i32, %arg0 : i32, i32
  }
}

module attributes {stable_mosaic.version = 11 : i64} {
  func.func @_fused_kernel(%arg0: i32, %arg1: memref<32x144xbf16, #tpu.memory_space<vmem>>, %arg2: memref<144x128xbf16, #tpu.memory_space<vmem>>, %arg3: memref<32x1xf32, #tpu.memory_space<vmem>>, %arg4: memref<32x128xf32, #tpu.memory_space<vmem>>) attributes {dimension_semantics = [#tpu.dimension_semantics<parallel>], iteration_bounds = array<i64: 1>, scalar_prefetch = 0 : i64, scratch_operands = 0 : i64, tpu.core_type = #tpu.core_type<tc>, window_params = [{pipeline_mode = #tpu.pipeline_mode<synchronous>, transform_indices = @transform_0, window_bounds = array<i64: 32, 144>}, {transform_indices = @transform_1, window_bounds = array<i64: 144, 128>}, {pipeline_mode = #tpu.pipeline_mode<synchronous>, transform_indices = @transform_2, window_bounds = array<i64: 32, 1>}, {transform_indices = @transform_3, window_bounds = array<i64: 32, 128>}]} {
    %c0 = arith.constant 0 : index
    %c0_0 = arith.constant 0 : index
    %0 = vector.load %arg1[%c0, %c0_0] : memref<32x144xbf16, #tpu.memory_space<vmem>>, vector<32x144xbf16>
    %c0_1 = arith.constant 0 : index
    %c0_2 = arith.constant 0 : index
    %1 = vector.load %arg2[%c0_1, %c0_2] : memref<144x128xbf16, #tpu.memory_space<vmem>>, vector<144x128xbf16>
    %cst = arith.constant dense<0.000000e+00> : vector<32x128xf32>
    %2 = tpu.matmul %0, %1, %cst {dimension_numbers = #tpu.dot_dimension_numbers<[1], [0], [0], [1], [0, 0, 1, 1], [], []>} : vector<32x144xbf16>, vector<144x128xbf16>, vector<32x128xf32> -> vector<32x128xf32>
    %c0_3 = arith.constant 0 : index
    %c0_4 = arith.constant 0 : index
    %3 = vector.load %arg3[%c0_3, %c0_4] : memref<32x1xf32, #tpu.memory_space<vmem>>, vector<32x1xf32>
    %4 = vector.broadcast %3 : vector<32x1xf32> to vector<32x128xf32>
    %5 = arith.addf %2, %4 : vector<32x128xf32>
    %cst_5 = arith.constant 0.000000e+00 : f32
    %6 = vector.broadcast %cst_5 : f32 to vector<32x128xf32>
    %7 = arith.maximumf %5, %6 : vector<32x128xf32>
    %c0_6 = arith.constant 0 : index
    %c0_7 = arith.constant 0 : index
    %8 = vector.load %arg4[%c0_6, %c0_7] : memref<32x128xf32, #tpu.memory_space<vmem>>, vector<32x128xf32>
    tpu.vector_store %arg4[%c0_6, %c0_7], %7 {strides = array<i32>} : memref<32x128xf32, #tpu.memory_space<vmem>>, vector<32x128xf32>,
    return
  }
  func.func @transform_0(%arg0: i32) -> (i32, i32) {
    %c0_i32 = arith.constant 0 : i32
    %c0_i32_0 = arith.constant 0 : i32
    %c0_i32_1 = arith.constant 0 : i32
    return %c0_i32, %c0_i32_0 : i32, i32
  }
  func.func @transform_1(%arg0: i32) -> (i32, i32) {
    %c0_i32 = arith.constant 0 : i32
    %c0_i32_0 = arith.constant 0 : i32
    return %c0_i32, %arg0 : i32, i32
  }
  func.func @transform_2(%arg0: i32) -> (i32, i32) {
    %c0_i32 = arith.constant 0 : i32
    %c0_i32_0 = arith.constant 0 : i32
    %c0_i32_1 = arith.constant 0 : i32
    return %c0_i32, %c0_i32_0 : i32, i32
  }
  func.func @transform_3(%arg0: i32) -> (i32, i32) {
    %c0_i32 = arith.constant 0 : i32
    %c0_i32_0 = arith.constant 0 : i32
    return %c0_i32, %arg0 : i32, i32
  }
}

module attributes {stable_mosaic.version = 11 : i64} {
  func.func @_fused_kernel(%arg0: i32, %arg1: memref<16x72xbf16, #tpu.memory_space<vmem>>, %arg2: memref<72x256xbf16, #tpu.memory_space<vmem>>, %arg3: memref<16x1xf32, #tpu.memory_space<vmem>>, %arg4: memref<16x256xf32, #tpu.memory_space<vmem>>) attributes {dimension_semantics = [#tpu.dimension_semantics<parallel>], iteration_bounds = array<i64: 2>, scalar_prefetch = 0 : i64, scratch_operands = 0 : i64, tpu.core_type = #tpu.core_type<tc>, window_params = [{pipeline_mode = #tpu.pipeline_mode<synchronous>, transform_indices = @transform_0, window_bounds = array<i64: 16, 72>}, {transform_indices = @transform_1, window_bounds = array<i64: 72, 256>}, {pipeline_mode = #tpu.pipeline_mode<synchronous>, transform_indices = @transform_2, window_bounds = array<i64: 16, 1>}, {transform_indices = @transform_3, window_bounds = array<i64: 16, 256>}]} {
    %c0 = arith.constant 0 : index
    %c0_0 = arith.constant 0 : index
    %0 = vector.load %arg1[%c0, %c0_0] : memref<16x72xbf16, #tpu.memory_space<vmem>>, vector<16x72xbf16>
    %c0_1 = arith.constant 0 : index
    %c0_2 = arith.constant 0 : index
    %1 = vector.load %arg2[%c0_1, %c0_2] : memref<72x256xbf16, #tpu.memory_space<vmem>>, vector<72x256xbf16>
    %cst = arith.constant dense<0.000000e+00> : vector<16x256xf32>
    %2 = tpu.matmul %0, %1, %cst {dimension_numbers = #tpu.dot_dimension_numbers<[1], [0], [0], [1], [0, 0, 1, 1], [], []>} : vector<16x72xbf16>, vector<72x256xbf16>, vector<16x256xf32> -> vector<16x256xf32>
    %c0_3 = arith.constant 0 : index
    %c0_4 = arith.constant 0 : index
    %3 = vector.load %arg3[%c0_3, %c0_4] : memref<16x1xf32, #tpu.memory_space<vmem>>, vector<16x1xf32>
    %4 = vector.broadcast %3 : vector<16x1xf32> to vector<16x256xf32>
    %5 = arith.addf %2, %4 : vector<16x256xf32>
    %6 = math.tanh %5 : vector<16x256xf32>
    %c0_5 = arith.constant 0 : index
    %c0_6 = arith.constant 0 : index
    %7 = vector.load %arg4[%c0_5, %c0_6] : memref<16x256xf32, #tpu.memory_space<vmem>>, vector<16x256xf32>
    tpu.vector_store %arg4[%c0_5, %c0_6], %6 {strides = array<i32>} : memref<16x256xf32, #tpu.memory_space<vmem>>, vector<16x256xf32>,
    return
  }
  func.func @transform_0(%arg0: i32) -> (i32, i32) {
    %c0_i32 = arith.constant 0 : i32
    %c0_i32_0 = arith.constant 0 : i32
    %c0_i32_1 = arith.constant 0 : i32
    return %c0_i32, %c0_i32_0 : i32, i32
  }
  func.func @transform_1(%arg0: i32) -> (i32, i32) {
    %c0_i32 = arith.constant 0 : i32
    %c0_i32_0 = arith.constant 0 : i32
    return %c0_i32, %arg0 : i32, i32
  }
  func.func @transform_2(%arg0: i32) -> (i32, i32) {
    %c0_i32 = arith.constant 0 : i32
    %c0_i32_0 = arith.constant 0 : i32
    %c0_i32_1 = arith.constant 0 : i32
    return %c0_i32, %c0_i32_0 : i32, i32
  }
  func.func @transform_3(%arg0: i32) -> (i32, i32) {
    %c0_i32 = arith.constant 0 : i32
    %c0_i32_0 = arith.constant 0 : i32
    return %c0_i32, %arg0 : i32, i32
  }
}

</mosaic_0001>

<llo_original>
// kernel: cycle_generator_forward.5
$region0: #{cycle_generator_forward.5}
  #allocation0 [shape = 'u32[]', space=smem, size = 0x4, offset = 0x4, fixed_abs, tag = 'smem constant byte address 0x4 - core index']
  #allocation1 [shape = 'u32[144,128]{1,0:T(1,128)}', space=vmem, size = 0x12000, scoped, tag = 'internal scratch']
  %s0 = inlined_call_operand.vmem [shape: bf16[8,32], index: 0, kind: input, shape index: {}]
  %s1 = inlined_call_operand.vmem [shape: bf16[32,512], index: 1, kind: input, shape index: {}]
  %s2 = inlined_call_operand.vmem [shape: f32[8,1], index: 2, kind: input, shape index: {}]
  %s3 = inlined_call_operand.vmem [shape: f32[8,512], index: 3, kind: output, shape index: {}]
  %s4 = sld [smem:[#allocation0]]
  $region83: #{cycle_generator_forward.5} parent=0
    _
  %s6 = ssub.s32 1, %s4
  %s7 = scalar_select 0, %s6, %s4
  $region1: #{cycle_generator_forward.5} parent=0
    #allocation2 [shape = 'u8[32768]{0}', space=vmem, size = 0x8000, scoped, tag = 'input window, operand 1']
    loop: start=0, step=1, limit=4
    $region2: #{cycle_generator_forward.5} parent=1 // loop_pre_header
      _
    $region3: #{cycle_generator_forward.5} parent=1 // loop_header
      %s9 = sphi 0, %s13
      %p10 = scmp.ge.s32.totalorder %s9, 4
      %s17 = sphi 0, %s17
      %s19 = sphi 0, %s17
      %s20 = sphi 0, %s19
      %s34 = sphi 0, %s20
      %s40 = sphi 0, %s42
      %s43 = sphi 0, %s40
      %s44 = sphi 0, %s43
      %s60 = sphi 0, %s44
      %s64 = sphi 0, %s64
      %s66 = sphi 0, %s64
      %s67 = sphi 0, %s66
      %s81 = sphi 0, %s67
      %s87 = sphi 0, %s89
      %s90 = sphi 0, %s87
      %s91 = sphi 0, %s90
      %s107 = sphi 0, %s91
    $region4: #{cycle_generator_forward.5} parent=1 // loop_header_branch
      %12 = sbr.rel (%p10) target = $region8
    $region5: #{cycle_generator_forward.5} parent=1 // loop_body
      %s14 = ssub.s32 %s9, 1
      %s15 = ssub.s32 %s9, 2
      %s16 = sadd.s32 %s9, 1
      %s18 = sadd.s32 %s17, 1
      %p21 = scmp.eq.s32.totalorder %s9, 1
      %p22 = scmp.ne.s32.totalorder %s17, %s19
      %p23 = scmp.eq.s32.totalorder %s9, 0
      %p24 = por %p22, %p23
      %p25 = scmp.ne.s32.totalorder %s17, %s19
      %p26 = scmp.eq.s32.totalorder %s14, 1
      %p27 = por %p25, %p26
      %p28 = scmp.ne.s32.totalorder %s19, %s20
      %p29 = scmp.eq.s32.totalorder %s14, 0
      %p30 = por %p28, %p29
      %p31 = scmp.ne.s32.totalorder %s19, %s20
      %p32 = scmp.eq.s32.totalorder %s15, 1
      %p33 = por %p31, %p32
      %p35 = scmp.ne.s32.totalorder %s20, %s34
      %p36 = scmp.eq.s32.totalorder %s15, 0
      %p37 = por %p35, %p36
      %s38 = ssub.s32 %s9, %s16
      %p39 = scmp.eq.s32.totalorder %s38, 0
      %s41 = sadd.s32 %s40, 1
      %s42 = scalar_select %p39, %s40, %s41
      %p45 = pneg %p39
      %p46 = scmp.eq.s32.totalorder %s9, 1
      %p47 = por %p45, %p46
      %p48 = scmp.ne.s32.totalorder %s40, %s43
      %p49 = scmp.eq.s32.totalorder %s9, 0
      %p50 = por %p48, %p49
      %p51 = scmp.ne.s32.totalorder %s40, %s43
      %p52 = scmp.eq.s32.totalorder %s14, 1
      %p53 = por %p51, %p52
      %p54 = scmp.ne.s32.totalorder %s43, %s44
      %p55 = scmp.eq.s32.totalorder %s14, 0
      %p56 = por %p54, %p55
      %p57 = scmp.ne.s32.totalorder %s43, %s44
      %p58 = scmp.eq.s32.totalorder %s15, 1
      %p59 = por %p57, %p58
      %p61 = scmp.ne.s32.totalorder %s44, %s60
      %p62 = scmp.eq.s32.totalorder %s15, 0
      %p63 = por %p61, %p62
      %s65 = sadd.s32 %s64, 1
      %p68 = scmp.eq.s32.totalorder %s9, 1
      %p69 = scmp.ne.s32.totalorder %s64, %s66
      %p70 = scmp.eq.s32.totalorder %s9, 0
      %p71 = por %p69, %p70
      %p72 = scmp.ne.s32.totalorder %s64, %s66
      %p73 = scmp.eq.s32.totalorder %s14, 1
      %p74 = por %p72, %p73
      %p75 = scmp.ne.s32.totalorder %s66, %s67
      %p76 = scmp.eq.s32.totalorder %s14, 0
      %p77 = por %p75, %p76
      %p78 = scmp.ne.s32.totalorder %s66, %s67
      %p79 = scmp.eq.s32.totalorder %s15, 1
      %p80 = por %p78, %p79
      %p82 = scmp.ne.s32.totalorder %s67, %s81
      %p83 = scmp.eq.s32.totalorder %s15, 0
      %p84 = por %p82, %p83
      %s85 = ssub.s32 %s9, %s16
      %p86 = scmp.eq.s32.totalorder %s85, 0
      %s88 = sadd.s32 %s87, 1
      %s89 = scalar_select %p86, %s87, %s88
      %p92 = pneg %p86
      %p93 = scmp.eq.s32.totalorder %s9, 1
      %p94 = por %p92, %p93
      %p95 = scmp.ne.s32.totalorder %s87, %s90
      %p96 = scmp.eq.s32.totalorder %s9, 0
      %p97 = por %p95, %p96
      %p98 = scmp.ne.s32.totalorder %s87, %s90
      %p99 = scmp.eq.s32.totalorder %s14, 1
      %p100 = por %p98, %p99
      %p101 = scmp.ne.s32.totalorder %s90, %s91
      %p102 = scmp.eq.s32.totalorder %s14, 0
      %p103 = por %p101, %p102
      %p104 = scmp.ne.s32.totalorder %s90, %s91
      %p105 = scmp.eq.s32.totalorder %s15, 1
      %p106 = por %p104, %p105
      %p108 = scmp.ne.s32.totalorder %s91, %s107
      %p109 = scmp.eq.s32.totalorder %s15, 0
      %p110 = por %p108, %p109
      %p111 = scmp.le.s32.totalorder 1, %s9
      %p112 = scmp.lt.s32.totalorder %s9, 3
      %p113 = pnand %p111, %p112
      %p114 = pneg %p113
      // Predicated region
      $region9: #{cycle_generator_forward.5} parent=5 // pred_check
        _
      $region10: #{cycle_generator_forward.5} parent=5 // pred_check_branch
        %116 = sbr.rel (%p113) target = $region12
      $region11: #{cycle_generator_forward.5} parent=5 // pred_region
        %s117 = ssub.s32 %s9, 1
        // Predicated region
        $region13: #{cycle_generator_forward.5} parent=11 // pred_check
          %p118 = pneg %p30
        $region14: #{cycle_generator_forward.5} parent=11 // pred_check_branch
          %120 = sbr.rel (%p118) target = $region16
        $region15: #{cycle_generator_forward.5} parent=11 // pred_region
          _
        $region16: #{cycle_generator_forward.5} parent=11 // pred_fallthru
          _
        // Predicated region
        $region17: #{cycle_generator_forward.5} parent=11 // pred_check
          %p121 = pneg %p77
        $region18: #{cycle_generator_forward.5} parent=11 // pred_check_branch
          %123 = sbr.rel (%p121) target = $region20
        $region19: #{cycle_generator_forward.5} parent=11 // pred_region
          _
        $region20: #{cycle_generator_forward.5} parent=11 // pred_fallthru
          _
      $region12: #{cycle_generator_forward.5} parent=5 // pred_fallthru
        _
      %p124 = scmp.lt.s32.totalorder %s9, 2
      // Predicated region
      $region21: #{cycle_generator_forward.5} parent=5 // pred_check
        %p125 = pneg %p124
      $region22: #{cycle_generator_forward.5} parent=5 // pred_check_branch
        %127 = sbr.rel (%p125) target = $region24
      $region23: #{cycle_generator_forward.5} parent=5 // pred_region
        // Predicated region
        $region25: #{cycle_generator_forward.5} parent=23 // pred_check
          %p128 = pneg %p50
        $region26: #{cycle_generator_forward.5} parent=23 // pred_check_branch
          %130 = sbr.rel (%p128) target = $region28
        $region27: #{cycle_generator_forward.5} parent=23 // pred_region
          %s131 = sand.u32 %s40, 1
          %s132 = sand.u32 %s40, 1
          %s133 = smul.addr %s132, 32
          %s134 = scalar_lea.vmem [#allocation2], %s133
          %s135 = smul.u32 2, %s9
          %s136 = smul.addr %s135, 4
          %s137 = scalar_lea.vmem %s1, %s136
          // Predicated region
          $region29: #{cycle_generator_forward.5} parent=27 // pred_check
            _
          $region30: #{cycle_generator_forward.5} parent=27 // pred_check_branch
            %139 = sbr.rel (0) target = $region32
          $region31: #{cycle_generator_forward.5} parent=27 // pred_region
            // Predicated region
            $region33: #{cycle_generator_forward.5} parent=31 // pred_check
              _
            $region34: #{cycle_generator_forward.5} parent=31 // pred_check_branch
              %141 = sbr.rel (0) target = $region36
            $region35: #{cycle_generator_forward.5} parent=31 // pred_region
              // Predicated region
              $region48: #{cycle_generator_forward.5} parent=35 // pred_check
                _
              $region49: #{cycle_generator_forward.5} parent=35 // pred_check_branch
                %163 = sbr.rel (0) target = $region51
              $region50: #{cycle_generator_forward.5} parent=35 // pred_region
                loop: start=0, step=1, limit=1
                $region52: #{cycle_generator_forward.5} parent=50 // loop_pre_header
                  _
                $region53: #{cycle_generator_forward.5} parent=50 // loop_header
                  %s165 = sphi 0, %s169
                  %p166 = scmp.ge.s32.totalorder %s165, 1
                  %s170 = sphi %s137, %s137
                  %s171 = sphi %s134, %s134
                $region54: #{cycle_generator_forward.5} parent=50 // loop_header_branch
                  %168 = sbr.rel (%p166) target = $region58
                $region55: #{cycle_generator_forward.5} parent=50 // loop_body
                  %v172 = vld [vmem:[%s170] sm:$0xff]
                  %173 = vst [vmem:[%s171] sm:$0xff] %v172
                  %v174 = vld [vmem:[%s170 + $0x10] sm:$0xff]
                  %175 = vst [vmem:[%s171 + $0x8] sm:$0xff] %v174
                  %v176 = vld [vmem:[%s170 + $0x20] sm:$0xff]
                  %177 = vst [vmem:[%s171 + $0x10] sm:$0xff] %v176
                  %v178 = vld [vmem:[%s170 + $0x30] sm:$0xff]
                  %179 = vst [vmem:[%s171 + $0x18] sm:$0xff] %v178
                $region56: #{cycle_generator_forward.5} parent=50 // loop_footer
                  %s169 = sadd.s32 1, %s165
                $region57: #{cycle_generator_forward.5} parent=50 // loop_footer_branch
                  %164 = sbr.rel target = $region53
                $region58: #{cycle_generator_forward.5} parent=50 // loop_exit
                  _
              $region51: #{cycle_generator_forward.5} parent=35 // pred_fallthru
                _
              // Predicated region
              $region59: #{cycle_generator_forward.5} parent=35 // pred_check
                _
              $region60: #{cycle_generator_forward.5} parent=35 // pred_check_branch
                %181 = sbr.rel target = $region62
              $region61: #{cycle_generator_forward.5} parent=35 // pred_region
                _
              $region62: #{cycle_generator_forward.5} parent=35 // pred_fallthru
                _
            $region36: #{cycle_generator_forward.5} parent=31 // pred_fallthru
              _
            // Predicated region
            $region37: #{cycle_generator_forward.5} parent=31 // pred_check
              _
            $region38: #{cycle_generator_forward.5} parent=31 // pred_check_branch
              %143 = sbr.rel target = $region40
            $region39: #{cycle_generator_forward.5} parent=31 // pred_region
              %s145 = ssub.s32 256, 1
              loop: start=0, step=1, limit=1
              $region41: #{cycle_generator_forward.5} parent=39 // loop_pre_header
                _
              $region42: #{cycle_generator_forward.5} parent=39 // loop_header
                %s147 = sphi 0, %s151
                %p148 = scmp.ge.s32.totalorder %s147, 1
                %s152 = sphi %s137, %s137
                %s153 = sphi %s134, %s134
              $region43: #{cycle_generator_forward.5} parent=39 // loop_header_branch
                %150 = sbr.rel (%p148) target = $region47
              $region44: #{cycle_generator_forward.5} parent=39 // loop_body
                %v154 = vld [vmem:[%s152] sm:%s145]
                %155 = vst [vmem:[%s153] sm:%s145] %v154
                %v156 = vld [vmem:[%s152 + $0x10] sm:%s145]
                %157 = vst [vmem:[%s153 + $0x8] sm:%s145] %v156
                %v158 = vld [vmem:[%s152 + $0x20] sm:%s145]
                %159 = vst [vmem:[%s153 + $0x10] sm:%s145] %v158
                %v160 = vld [vmem:[%s152 + $0x30] sm:%s145]
                %161 = vst [vmem:[%s153 + $0x18] sm:%s145] %v160
              $region45: #{cycle_generator_forward.5} parent=39 // loop_footer
                %s151 = sadd.s32 1, %s147
              $region46: #{cycle_generator_forward.5} parent=39 // loop_footer_branch
                %146 = sbr.rel target = $region42
              $region47: #{cycle_generator_forward.5} parent=39 // loop_exit
                _
            $region40: #{cycle_generator_forward.5} parent=31 // pred_fallthru
              _
          $region32: #{cycle_generator_forward.5} parent=27 // pred_fallthru
            _
          %182 = vnop
        $region28: #{cycle_generator_forward.5} parent=23 // pred_fallthru
          _
      $region24: #{cycle_generator_forward.5} parent=5 // pred_fallthru
        _
      %p183 = scmp.le.s32.totalorder 1, %s9
      %p184 = scmp.lt.s32.totalorder %s9, 3
      %p185 = pnand %p183, %p184
      %p186 = pneg %p185
      // Predicated region
      $region63: #{cycle_generator_forward.5} parent=5 // pred_check
        _
      $region64: #{cycle_generator_forward.5} parent=5 // pred_check_branch
        %188 = sbr.rel (%p185) target = $region66
      $region65: #{cycle_generator_forward.5} parent=5 // pred_region
        %s189 = ssub.s32 %s9, 1
        %s190 = sand.u32 %s43, 1
        %s191 = sand.u32 %s43, 1
        %s192 = smul.addr %s191, 32
        %s193 = scalar_lea.vmem [#allocation2], %s192
        // Predicated region
        $region67: #{cycle_generator_forward.5} parent=65 // pred_check
          %p194 = pneg %p56
        $region68: #{cycle_generator_forward.5} parent=65 // pred_check_branch
          %196 = sbr.rel (%p194) target = $region70
        $region69: #{cycle_generator_forward.5} parent=65 // pred_region
          _
        $region70: #{cycle_generator_forward.5} parent=65 // pred_fallthru
          _
        %p197 = pneg %p30
        %p198 = pneg %p27
        %s199 = sand.u32 %s43, 1
        %s200 = sand.u32 %s43, 1
        %s201 = smul.addr %s200, 32
        %s202 = scalar_lea.vmem [#allocation2], %s201
        %p203 = pneg %p56
        %p204 = pneg %p53
        %p205 = pneg %p77
        %p206 = pneg %p74
        %p207 = pneg %p103
        %p208 = pneg %p100
        %s209 = smul.u32 2, %s14
        %p210 = scmp.lt.s32.totalorder %s209, 3
        %s211 = scalar_select %p210, %s209, 3
        %s212 = smul.addr %s211, 8
        %s213 = scalar_lea.vmem %s3, %s212
        %s214 = smul.u32 2, %s14
        %s215 = smul.u32 2, %s14
        %p216 = scmp.lt.s32.totalorder %s215, 3
        %s217 = scalar_select %p216, %s215, 3
        %s218 = smul.addr %s217, 8
        %s219 = scalar_lea.vmem %s3, %s218
        %s220 = smul.u32 2, %s14
        %v222 = vld [vmem:[%s0] sm:$0xf]
        %v223 = vld [vmem:[%s193] sm:$0xff]
        %v224 = vld [vmem:[%s193 + $0x8] sm:$0xff]
        %v225 = vld [vmem:[%s193 + $0x10] sm:$0xff]
        %v226 = vld [vmem:[%s193 + $0x18] sm:$0xff]
        %v227 = vld [vmem:[%s2] sm:$0xff]
        %229 = vset.pattern.permute.xlu0 0
        %230 = vperm.xlu0 %229, %v227
        %v231 = vpop.permute.xlu0 %230
        %v237 = vunpack.c.l.b16 %v223
        %v238 = vunpack.c.h.b16 %v223
        %v239 = vunpack.c.l.b16 %v224
        %v240 = vunpack.c.h.b16 %v224
        %v241 = vunpack.c.l.b16 %v225
        %v242 = vunpack.c.h.b16 %v225
        %v243 = vunpack.c.l.b16 %v226
        %v244 = vunpack.c.h.b16 %v226
        %v245 = vpack.c.b16 %v239, %v237
        %v246 = vpack.c.b16 %v240, %v238
        %v247 = vpack.c.b16 %v243, %v241
        %v248 = vpack.c.b16 %v244, %v242
        %vm253 = vcmask 261120
        %v255 = vsel %vm253, %v222, 0
        %257 = vmatprep.subr.bf16.mxu0 0
        %258 = vmatpush1.bf16.msra.mxu0 0
        %259 = vmatprep.subr.bf16.mxu0 0
        %260 = vmatpush1.bf16.msra.mxu0 0
        %261 = vmatprep.subr.bf16.mxu0 0
        %262 = vmatpush1.bf16.msra.mxu0 0
        %263 = vmatprep.subr.bf16.mxu0 0
        %264 = vmatpush1.bf16.msra.mxu0 0
        %265 = vmatprep.subr.bf16.mxu0 0
        %266 = vmatpush1.bf16.msra.mxu0 0
        %267 = vmatprep.subr.bf16.mxu0 0
        %268 = vmatpush1.bf16.msra.mxu0 0
        %269 = vmatprep.subr.bf16.mxu0 %v248
        %270 = vmatpush1.bf16.msra.mxu0 %v247
        %271 = vmatprep.subr.bf16.mxu0 %v246
        %272 = vmatpush1.bf16.msra.mxu0 %v245
        %273 = vmatprep.subr.bf16.mxu0 0
        %274 = vmatpush2.bf16.msra.mxu0 0
        %275 = vmatprep.subr.bf16.mxu0 0
        %276 = vmatpush2.bf16.msra.mxu0 0
        %277 = vmatprep.subr.bf16.mxu0 0
        %278 = vmatpush2.bf16.msra.mxu0 0
        %279 = vmatprep.subr.bf16.mxu0 0
        %280 = vmatpush2.bf16.msra.mxu0 0
        %281 = vmatprep.subr.bf16.mxu0 0
        %282 = vmatpush2.bf16.msra.mxu0 0
        %283 = vmatprep.subr.bf16.mxu0 0
        %284 = vmatpush2.bf16.msra.mxu0 0
        %285 = vmatprep.subr.bf16.mxu0 0
        %286 = vmatpush2.bf16.msra.mxu0 0
        %287 = vmatprep.subr.bf16.mxu0 0
        %288 = vmatpush2.bf16.msra.mxu0 0
        %289 = vmatprep.mubr.bf16.mxu0 0
        %290 = vmatmul.mubr.bf16.gmra.mxu0 %v255
        %v291 = vpop.f32.mrf.mxu0
        %v292 = vadd.f32 %v231, %v291
        %v293 = vpop.f32.mrf.mxu0
        %v294 = vadd.f32 %v231, %v293
        %v295 = vpop.f32.mrf.mxu0
        %v296 = vpop.f32.mrf.mxu0
        %297 = vdwg.mxu0
        %v298 = vmax.f32 %v292, 0.0
        %v299 = vmax.f32 %v294, 0.0
        %300 = vst [vmem:[%s219] sm:$0xff] %v298
        %301 = vst [vmem:[%s219 + $0x8] sm:$0xff] %v299
        %s302 = smul.u32 2, %s14
        %p303 = scmp.lt.s32.totalorder %s302, 3
        %s304 = scalar_select %p303, %s302, 3
        %s305 = smul.addr %s304, 8
        %s306 = scalar_lea.vmem %s3, %s305
        // Predicated region
        $region71: #{cycle_generator_forward.5} parent=65 // pred_check
          %p307 = pneg %p100
        $region72: #{cycle_generator_forward.5} parent=65 // pred_check_branch
          %309 = sbr.rel (%p307) target = $region74
        $region73: #{cycle_generator_forward.5} parent=65 // pred_region
          %s310 = smul.u32 2, %s14
        $region74: #{cycle_generator_forward.5} parent=65 // pred_fallthru
          _
      $region66: #{cycle_generator_forward.5} parent=5 // pred_fallthru
        _
      %p311 = scmp.le.s32.totalorder 2, %s9
      // Predicated region
      $region75: #{cycle_generator_forward.5} parent=5 // pred_check
        %p312 = pneg %p311
      $region76: #{cycle_generator_forward.5} parent=5 // pred_check_branch
        %314 = sbr.rel (%p312) target = $region78
      $region77: #{cycle_generator_forward.5} parent=5 // pred_region
        %s315 = ssub.s32 %s9, 2
        // Predicated region
        $region79: #{cycle_generator_forward.5} parent=77 // pred_check
          %p316 = pneg %p106
        $region80: #{cycle_generator_forward.5} parent=77 // pred_check_branch
          %318 = sbr.rel (%p316) target = $region82
        $region81: #{cycle_generator_forward.5} parent=77 // pred_region
          %s319 = smul.u32 2, %s15
          %p320 = scmp.lt.s32.totalorder %s319, 3
          %s321 = scalar_select %p320, %s319, 3
          %s322 = smul.addr %s321, 8
          %s323 = scalar_lea.vmem %s3, %s322
        $region82: #{cycle_generator_forward.5} parent=77 // pred_fallthru
          _
      $region78: #{cycle_generator_forward.5} parent=5 // pred_fallthru
        _
    $region6: #{cycle_generator_forward.5} parent=1 // loop_footer
      %s13 = sadd.s32 1, %s9
    $region7: #{cycle_generator_forward.5} parent=1 // loop_footer_branch
      %8 = sbr.rel target = $region3
    $region8: #{cycle_generator_forward.5} parent=1 // loop_exit
      _

// kernel: cycle_generator_forward.6
$region0: #{cycle_generator_forward.6}
  #allocation0 [shape = 'u32[]', space=smem, size = 0x4, offset = 0x4, fixed_abs, tag = 'smem constant byte address 0x4 - core index']
  #allocation1 [shape = 'u32[144,128]{1,0:T(1,128)}', space=vmem, size = 0x12000, scoped, tag = 'internal scratch']
  %s0 = inlined_call_operand.vmem [shape: bf16[16,72], index: 0, kind: input, shape index: {}]
  %s1 = inlined_call_operand.vmem [shape: bf16[72,128], index: 1, kind: input, shape index: {}]
  %s2 = inlined_call_operand.vmem [shape: f32[16,1], index: 2, kind: input, shape index: {}]
  %s3 = inlined_call_operand.vmem [shape: f32[16,128], index: 3, kind: output, shape index: {}]
  %s4 = sld [smem:[#allocation0]]
  $region22: #{cycle_generator_forward.6} parent=0
    _
  %s6 = ssub.s32 1, %s4
  %s7 = scalar_select 0, %s6, %s4
  // Predicated region
  $region2: #{cycle_generator_forward.6} parent=0 // pred_check
    _
  $region3: #{cycle_generator_forward.6} parent=0 // pred_check_branch
    %9 = sbr.rel (0) target = $region5
  $region4: #{cycle_generator_forward.6} parent=0 // pred_region
    _
  $region5: #{cycle_generator_forward.6} parent=0 // pred_fallthru
    _
  // Predicated region
  $region6: #{cycle_generator_forward.6} parent=0 // pred_check
    _
  $region7: #{cycle_generator_forward.6} parent=0 // pred_check_branch
    %11 = sbr.rel (0) target = $region9
  $region8: #{cycle_generator_forward.6} parent=0 // pred_region
    _
  $region9: #{cycle_generator_forward.6} parent=0 // pred_fallthru
    _
  // Predicated region
  $region10: #{cycle_generator_forward.6} parent=0 // pred_check
    _
  $region11: #{cycle_generator_forward.6} parent=0 // pred_check_branch
    %13 = sbr.rel (0) target = $region13
  $region12: #{cycle_generator_forward.6} parent=0 // pred_region
    _
  $region13: #{cycle_generator_forward.6} parent=0 // pred_fallthru
    _
  %v15 = vld [vmem:[%s0] sm:$0xf]
  %v16 = vld [vmem:[%s0 + $0x4] sm:$0xf]
  %v17 = vld [vmem:[%s1] sm:$0xf]
  %v18 = vld [vmem:[%s1 + $0x4] sm:$0xf]
  %v19 = vld [vmem:[%s1 + $0x8] sm:$0xf]
  %v20 = vld [vmem:[%s1 + $0xc] sm:$0xf]
  %v21 = vld [vmem:[%s1 + $0x10] sm:$0xf]
  %v22 = vld [vmem:[%s1 + $0x14] sm:$0xf]
  %v23 = vld [vmem:[%s1 + $0x18] sm:$0xf]
  %v24 = vld [vmem:[%s1 + $0x1c] sm:$0xf]
  %v25 = vld [vmem:[%s1 + $0x20] sm:$0xf]
  %v26 = vld [vmem:[%s2] sm:$0xff]
  %v27 = vld [vmem:[%s2 + $0x8] sm:$0xff]
  %29 = vset.pattern.permute.xlu0 0
  %30 = vperm.xlu0 %29, %v26
  %v31 = vpop.permute.xlu0 %30
  %34 = vset.pattern.permute.xlu0 0
  %35 = vperm.xlu0 %34, %v27
  %v36 = vpop.permute.xlu0 %35
  %v40 = vunpack.c.l.b16 %v15
  %v41 = vunpack.c.l.b16 %v16
  %v42 = vpack.c.b16 %v41, %v40
  %v52 = vunpack.c.l.b16 %v17
  %v53 = vunpack.c.l.b16 %v18
  %v54 = vunpack.c.l.b16 %v19
  %v55 = vunpack.c.l.b16 %v20
  %v56 = vunpack.c.l.b16 %v21
  %v57 = vunpack.c.l.b16 %v22
  %v58 = vunpack.c.l.b16 %v23
  %v59 = vunpack.c.l.b16 %v24
  %v60 = vunpack.c.l.b16 %v25
  %v61 = vpack.c.b16 %v53, %v52
  %v62 = vpack.c.b16 %v55, %v54
  %v63 = vpack.c.b16 %v57, %v56
  %v64 = vpack.c.b16 %v59, %v58
  %v65 = vpack.c.b16 %v60, %v60
  %vm70 = vcmask 588800
  %v72 = vsel %vm70, %v42, 0
  %vm74 = vcmask 1043456
  %v76 = vsel %vm74, %v65, 0
  %78 = vmatprep.subr.bf16.mxu0 0
  %79 = vmatpush1.bf16.msra.mxu0 0
  %80 = vmatprep.subr.bf16.mxu0 0
  %81 = vmatpush1.bf16.msra.mxu0 0
  %82 = vmatprep.subr.bf16.mxu0 0
  %83 = vmatpush1.bf16.msra.mxu0 0
  %84 = vmatprep.subr.bf16.mxu0 0
  %85 = vmatpush1.bf16.msra.mxu0 %v76
  %86 = vmatprep.subr.bf16.mxu0 0
  %87 = vmatpush1.bf16.msra.mxu0 %v64
  %88 = vmatprep.subr.bf16.mxu0 0
  %89 = vmatpush1.bf16.msra.mxu0 %v63
  %90 = vmatprep.subr.bf16.mxu0 0
  %91 = vmatpush1.bf16.msra.mxu0 %v62
  %92 = vmatprep.subr.bf16.mxu0 0
  %93 = vmatpush1.bf16.msra.mxu0 %v61
  %94 = vmatprep.subr.bf16.mxu0 0
  %95 = vmatpush2.bf16.msra.mxu0 0
  %96 = vmatprep.subr.bf16.mxu0 0
  %97 = vmatpush2.bf16.msra.mxu0 0
  %98 = vmatprep.subr.bf16.mxu0 0
  %99 = vmatpush2.bf16.msra.mxu0 0
  %100 = vmatprep.subr.bf16.mxu0 0
  %101 = vmatpush2.bf16.msra.mxu0 0
  %102 = vmatprep.subr.bf16.mxu0 0
  %103 = vmatpush2.bf16.msra.mxu0 0
  %104 = vmatprep.subr.bf16.mxu0 0
  %105 = vmatpush2.bf16.msra.mxu0 0
  %106 = vmatprep.subr.bf16.mxu0 0
  %107 = vmatpush2.bf16.msra.mxu0 0
  %108 = vmatprep.subr.bf16.mxu0 0
  %109 = vmatpush2.bf16.msra.mxu0 0
  %110 = vmatprep.mubr.bf16.mxu0 0
  %111 = vmatmul.mubr.bf16.gmra.mxu0 %v72
  %v112 = vpop.f32.mrf.mxu0
  %v113 = vadd.f32 %v31, %v112
  %v114 = vpop.f32.mrf.mxu0
  %v115 = vpop.f32.mrf.mxu0
  %v116 = vadd.f32 %v36, %v115
  %v117 = vpop.f32.mrf.mxu0
  %118 = vdwg.mxu0
  %v119 = vmax.f32 %v113, 0.0
  %v120 = vmax.f32 %v116, 0.0
  %121 = vst [vmem:[%s3] sm:$0xff] %v119
  %122 = vst [vmem:[%s3 + $0x8] sm:$0xff] %v120
  // Predicated region
  $region14: #{cycle_generator_forward.6} parent=0 // pred_check
    _
  $region15: #{cycle_generator_forward.6} parent=0 // pred_check_branch
    %124 = sbr.rel (0) target = $region17
  $region16: #{cycle_generator_forward.6} parent=0 // pred_region
    _
  $region17: #{cycle_generator_forward.6} parent=0 // pred_fallthru
    _
  // Predicated region
  $region18: #{cycle_generator_forward.6} parent=0 // pred_check
    _
  $region19: #{cycle_generator_forward.6} parent=0 // pred_check_branch
    %126 = sbr.rel (0) target = $region21
  $region20: #{cycle_generator_forward.6} parent=0 // pred_region
    _
  $region21: #{cycle_generator_forward.6} parent=0 // pred_fallthru
    _

// kernel: cycle_generator_forward.7
$region0: #{cycle_generator_forward.7}
  #allocation0 [shape = 'u32[]', space=smem, size = 0x4, offset = 0x4, fixed_abs, tag = 'smem constant byte address 0x4 - core index']
  #allocation1 [shape = 'u32[144,128]{1,0:T(1,128)}', space=vmem, size = 0x12000, scoped, tag = 'internal scratch']
  %s0 = inlined_call_operand.vmem [shape: bf16[16,144], index: 0, kind: input, shape index: {}]
  %s1 = inlined_call_operand.vmem [shape: bf16[144,128], index: 1, kind: input, shape index: {}]
  %s2 = inlined_call_operand.vmem [shape: f32[16,1], index: 2, kind: input, shape index: {}]
  %s3 = inlined_call_operand.vmem [shape: f32[16,128], index: 3, kind: input, shape index: {}]
  %s4 = inlined_call_operand.vmem [shape: f32[16,128], index: 4, kind: output, shape index: {}]
  %s5 = sld [smem:[#allocation0]]
  $region26: #{cycle_generator_forward.7} parent=0
    _
  %s7 = ssub.s32 1, %s5
  %s8 = scalar_select 0, %s7, %s5
  // Predicated region
  $region2: #{cycle_generator_forward.7} parent=0 // pred_check
    _
  $region3: #{cycle_generator_forward.7} parent=0 // pred_check_branch
    %10 = sbr.rel (0) target = $region5
  $region4: #{cycle_generator_forward.7} parent=0 // pred_region
    _
  $region5: #{cycle_generator_forward.7} parent=0 // pred_fallthru
    _
  // Predicated region
  $region6: #{cycle_generator_forward.7} parent=0 // pred_check
    _
  $region7: #{cycle_generator_forward.7} parent=0 // pred_check_branch
    %12 = sbr.rel (0) target = $region9
  $region8: #{cycle_generator_forward.7} parent=0 // pred_region
    _
  $region9: #{cycle_generator_forward.7} parent=0 // pred_fallthru
    _
  // Predicated region
  $region10: #{cycle_generator_forward.7} parent=0 // pred_check
    _
  $region11: #{cycle_generator_forward.7} parent=0 // pred_check_branch
    %14 = sbr.rel (0) target = $region13
  $region12: #{cycle_generator_forward.7} parent=0 // pred_region
    _
  $region13: #{cycle_generator_forward.7} parent=0 // pred_fallthru
    _
  // Predicated region
  $region14: #{cycle_generator_forward.7} parent=0 // pred_check
    _
  $region15: #{cycle_generator_forward.7} parent=0 // pred_check_branch
    %16 = sbr.rel (0) target = $region17
  $region16: #{cycle_generator_forward.7} parent=0 // pred_region
    _
  $region17: #{cycle_generator_forward.7} parent=0 // pred_fallthru
    _
  %v18 = vld [vmem:[%s0] sm:$0xff]
  %v19 = vld [vmem:[%s0 + $0x8] sm:$0xff]
  %v20 = vld [vmem:[%s1] sm:$0xf]
  %v21 = vld [vmem:[%s1 + $0x4] sm:$0xf]
  %v22 = vld [vmem:[%s1 + $0x8] sm:$0xf]
  %v23 = vld [vmem:[%s1 + $0xc] sm:$0xf]
  %v24 = vld [vmem:[%s1 + $0x10] sm:$0xf]
  %v25 = vld [vmem:[%s1 + $0x14] sm:$0xf]
  %v26 = vld [vmem:[%s1 + $0x18] sm:$0xf]
  %v27 = vld [vmem:[%s1 + $0x1c] sm:$0xf]
  %v28 = vld [vmem:[%s1 + $0x20] sm:$0xf]
  %v29 = vld [vmem:[%s1 + $0x24] sm:$0xf]
  %v30 = vld [vmem:[%s1 + $0x28] sm:$0xf]
  %v31 = vld [vmem:[%s1 + $0x2c] sm:$0xf]
  %v32 = vld [vmem:[%s1 + $0x30] sm:$0xf]
  %v33 = vld [vmem:[%s1 + $0x34] sm:$0xf]
  %v34 = vld [vmem:[%s1 + $0x38] sm:$0xf]
  %v35 = vld [vmem:[%s1 + $0x3c] sm:$0xf]
  %v36 = vld [vmem:[%s1 + $0x40] sm:$0xf]
  %v37 = vld [vmem:[%s1 + $0x44] sm:$0xf]
  %v38 = vld [vmem:[%s2] sm:$0xff]
  %v39 = vld [vmem:[%s2 + $0x8] sm:$0xff]
  %41 = vset.pattern.permute.xlu0 0
  %42 = vperm.xlu0 %41, %v38
  %v43 = vpop.permute.xlu0 %42
  %46 = vset.pattern.permute.xlu0 0
  %47 = vperm.xlu0 %46, %v39
  %v48 = vpop.permute.xlu0 %47
  %v52 = vunpack.c.l.b16 %v18
  %v53 = vunpack.c.h.b16 %v18
  %v54 = vunpack.c.l.b16 %v19
  %v55 = vunpack.c.h.b16 %v19
  %v56 = vpack.c.b16 %v54, %v52
  %v57 = vpack.c.b16 %v55, %v53
  %v77 = vunpack.c.l.b16 %v20
  %v78 = vunpack.c.l.b16 %v21
  %v79 = vunpack.c.l.b16 %v22
  %v80 = vunpack.c.l.b16 %v23
  %v81 = vunpack.c.l.b16 %v24
  %v82 = vunpack.c.l.b16 %v25
  %v83 = vunpack.c.l.b16 %v26
  %v84 = vunpack.c.l.b16 %v27
  %v85 = vunpack.c.l.b16 %v28
  %v86 = vunpack.c.l.b16 %v29
  %v87 = vunpack.c.l.b16 %v30
  %v88 = vunpack.c.l.b16 %v31
  %v89 = vunpack.c.l.b16 %v32
  %v90 = vunpack.c.l.b16 %v33
  %v91 = vunpack.c.l.b16 %v34
  %v92 = vunpack.c.l.b16 %v35
  %v93 = vunpack.c.l.b16 %v36
  %v94 = vunpack.c.l.b16 %v37
  %v95 = vpack.c.b16 %v78, %v77
  %v96 = vpack.c.b16 %v80, %v79
  %v97 = vpack.c.b16 %v82, %v81
  %v98 = vpack.c.b16 %v84, %v83
  %v99 = vpack.c.b16 %v86, %v85
  %v100 = vpack.c.b16 %v88, %v87
  %v101 = vpack.c.b16 %v90, %v89
  %v102 = vpack.c.b16 %v92, %v91
  %v103 = vpack.c.b16 %v94, %v93
  %vm113 = vcmask 130048
  %v115 = vsel %vm113, %v57, 0
  %117 = vmatprep.subr.bf16.mxu0 0
  %118 = vmatpush1.bf16.msra.mxu0 %v102
  %119 = vmatprep.subr.bf16.mxu0 0
  %120 = vmatpush1.bf16.msra.mxu0 %v101
  %121 = vmatprep.subr.bf16.mxu0 0
  %122 = vmatpush1.bf16.msra.mxu0 %v100
  %123 = vmatprep.subr.bf16.mxu0 0
  %124 = vmatpush1.bf16.msra.mxu0 %v99
  %125 = vmatprep.subr.bf16.mxu0 0
  %126 = vmatpush1.bf16.msra.mxu0 %v98
  %127 = vmatprep.subr.bf16.mxu0 0
  %128 = vmatpush1.bf16.msra.mxu0 %v97
  %129 = vmatprep.subr.bf16.mxu0 0
  %130 = vmatpush1.bf16.msra.mxu0 %v96
  %131 = vmatprep.subr.bf16.mxu0 0
  %132 = vmatpush1.bf16.msra.mxu0 %v95
  %133 = vmatprep.subr.bf16.mxu0 0
  %134 = vmatpush2.bf16.msra.mxu0 0
  %135 = vmatprep.subr.bf16.mxu0 0
  %136 = vmatpush2.bf16.msra.mxu0 0
  %137 = vmatprep.subr.bf16.mxu0 0
  %138 = vmatpush2.bf16.msra.mxu0 0
  %139 = vmatprep.subr.bf16.mxu0 0
  %140 = vmatpush2.bf16.msra.mxu0 0
  %141 = vmatprep.subr.bf16.mxu0 0
  %142 = vmatpush2.bf16.msra.mxu0 0
  %143 = vmatprep.subr.bf16.mxu0 0
  %144 = vmatpush2.bf16.msra.mxu0 0
  %145 = vmatprep.subr.bf16.mxu0 0
  %146 = vmatpush2.bf16.msra.mxu0 0
  %147 = vmatprep.subr.bf16.mxu0 0
  %148 = vmatpush2.bf16.msra.mxu0 %v103
  %149 = vmatprep.mubr.bf16.mxu0 %v115
  %150 = vmatmul.mubr.bf16.gmra.mxu0 %v56
  %v151 = vpop.f32.mrf.mxu0
  %v152 = vadd.f32 %v43, %v151
  %v153 = vpop.f32.mrf.mxu0
  %v154 = vpop.f32.mrf.mxu0
  %v155 = vadd.f32 %v48, %v154
  %v156 = vpop.f32.mrf.mxu0
  %157 = vdwg.mxu0
  %v158 = vld [vmem:[%s3] sm:$0xff]
  %v159 = vld [vmem:[%s3 + $0x8] sm:$0xff]
  %v160 = vadd.f32 %v152, %v158
  %v161 = vadd.f32 %v155, %v159
  %v162 = vmax.f32 %v160, 0.0
  %v163 = vmax.f32 %v161, 0.0
  %164 = vst [vmem:[%s4] sm:$0xff] %v162
  %165 = vst [vmem:[%s4 + $0x8] sm:$0xff] %v163
  // Predicated region
  $region18: #{cycle_generator_forward.7} parent=0 // pred_check
    _
  $region19: #{cycle_generator_forward.7} parent=0 // pred_check_branch
    %167 = sbr.rel (0) target = $region21
  $region20: #{cycle_generator_forward.7} parent=0 // pred_region
    _
  $region21: #{cycle_generator_forward.7} parent=0 // pred_fallthru
    _
  // Predicated region
  $region22: #{cycle_generator_forward.7} parent=0 // pred_check
    _
  $region23: #{cycle_generator_forward.7} parent=0 // pred_check_branch
    %169 = sbr.rel (0) target = $region25
  $region24: #{cycle_generator_forward.7} parent=0 // pred_region
    _
  $region25: #{cycle_generator_forward.7} parent=0 // pred_fallthru
    _

// kernel: cycle_generator_forward.8
$region0: #{cycle_generator_forward.8}
  #allocation0 [shape = 'u32[]', space=smem, size = 0x4, offset = 0x4, fixed_abs, tag = 'smem constant byte address 0x4 - core index']
  #allocation1 [shape = 'u32[144,128]{1,0:T(1,128)}', space=vmem, size = 0x12000, scoped, tag = 'internal scratch']
  %s0 = inlined_call_operand.vmem [shape: bf16[32,144], index: 0, kind: input, shape index: {}]
  %s1 = inlined_call_operand.vmem [shape: bf16[144,128], index: 1, kind: input, shape index: {}]
  %s2 = inlined_call_operand.vmem [shape: f32[32,1], index: 2, kind: input, shape index: {}]
  %s3 = inlined_call_operand.vmem [shape: f32[32,128], index: 3, kind: output, shape index: {}]
  %s4 = sld [smem:[#allocation0]]
  $region22: #{cycle_generator_forward.8} parent=0
    _
  %s6 = ssub.s32 1, %s4
  %s7 = scalar_select 0, %s6, %s4
  // Predicated region
  $region2: #{cycle_generator_forward.8} parent=0 // pred_check
    _
  $region3: #{cycle_generator_forward.8} parent=0 // pred_check_branch
    %9 = sbr.rel (0) target = $region5
  $region4: #{cycle_generator_forward.8} parent=0 // pred_region
    _
  $region5: #{cycle_generator_forward.8} parent=0 // pred_fallthru
    _
  // Predicated region
  $region6: #{cycle_generator_forward.8} parent=0 // pred_check
    _
  $region7: #{cycle_generator_forward.8} parent=0 // pred_check_branch
    %11 = sbr.rel (0) target = $region9
  $region8: #{cycle_generator_forward.8} parent=0 // pred_region
    _
  $region9: #{cycle_generator_forward.8} parent=0 // pred_fallthru
    _
  // Predicated region
  $region10: #{cycle_generator_forward.8} parent=0 // pred_check
    _
  $region11: #{cycle_generator_forward.8} parent=0 // pred_check_branch
    %13 = sbr.rel (0) target = $region13
  $region12: #{cycle_generator_forward.8} parent=0 // pred_region
    _
  $region13: #{cycle_generator_forward.8} parent=0 // pred_fallthru
    _
  %v15 = vld [vmem:[%s0] sm:$0xff]
  %v16 = vld [vmem:[%s0 + $0x8] sm:$0xff]
  %v17 = vld [vmem:[%s0 + $0x10] sm:$0xff]
  %v18 = vld [vmem:[%s0 + $0x18] sm:$0xff]
  %v19 = vld [vmem:[%s1] sm:$0xf]
  %v20 = vld [vmem:[%s1 + $0x4] sm:$0xf]
  %v21 = vld [vmem:[%s1 + $0x8] sm:$0xf]
  %v22 = vld [vmem:[%s1 + $0xc] sm:$0xf]
  %v23 = vld [vmem:[%s1 + $0x10] sm:$0xf]
  %v24 = vld [vmem:[%s1 + $0x14] sm:$0xf]
  %v25 = vld [vmem:[%s1 + $0x18] sm:$0xf]
  %v26 = vld [vmem:[%s1 + $0x1c] sm:$0xf]
  %v27 = vld [vmem:[%s1 + $0x20] sm:$0xf]
  %v28 = vld [vmem:[%s1 + $0x24] sm:$0xf]
  %v29 = vld [vmem:[%s1 + $0x28] sm:$0xf]
  %v30 = vld [vmem:[%s1 + $0x2c] sm:$0xf]
  %v31 = vld [vmem:[%s1 + $0x30] sm:$0xf]
  %v32 = vld [vmem:[%s1 + $0x34] sm:$0xf]
  %v33 = vld [vmem:[%s1 + $0x38] sm:$0xf]
  %v34 = vld [vmem:[%s1 + $0x3c] sm:$0xf]
  %v35 = vld [vmem:[%s1 + $0x40] sm:$0xf]
  %v36 = vld [vmem:[%s1 + $0x44] sm:$0xf]
  %v37 = vld [vmem:[%s2] sm:$0xff]
  %v38 = vld [vmem:[%s2 + $0x8] sm:$0xff]
  %v39 = vld [vmem:[%s2 + $0x10] sm:$0xff]
  %v40 = vld [vmem:[%s2 + $0x18] sm:$0xff]
  %42 = vset.pattern.permute.xlu0 0
  %43 = vperm.xlu0 %42, %v37
  %v44 = vpop.permute.xlu0 %43
  %47 = vset.pattern.permute.xlu0 0
  %48 = vperm.xlu0 %47, %v38
  %v49 = vpop.permute.xlu0 %48
  %52 = vset.pattern.permute.xlu0 0
  %53 = vperm.xlu0 %52, %v39
  %v54 = vpop.permute.xlu0 %53
  %57 = vset.pattern.permute.xlu0 0
  %58 = vperm.xlu0 %57, %v40
  %v59 = vpop.permute.xlu0 %58
  %v65 = vunpack.c.l.b16 %v15
  %v66 = vunpack.c.h.b16 %v15
  %v67 = vunpack.c.l.b16 %v16
  %v68 = vunpack.c.h.b16 %v16
  %v69 = vunpack.c.l.b16 %v17
  %v70 = vunpack.c.h.b16 %v17
  %v71 = vunpack.c.l.b16 %v18
  %v72 = vunpack.c.h.b16 %v18
  %v73 = vpack.c.b16 %v67, %v65
  %v74 = vpack.c.b16 %v68, %v66
  %v75 = vpack.c.b16 %v71, %v69
  %v76 = vpack.c.b16 %v72, %v70
  %v97 = vunpack.c.l.b16 %v19
  %v98 = vunpack.c.l.b16 %v20
  %v99 = vunpack.c.l.b16 %v21
  %v100 = vunpack.c.l.b16 %v22
  %v101 = vunpack.c.l.b16 %v23
  %v102 = vunpack.c.l.b16 %v24
  %v103 = vunpack.c.l.b16 %v25
  %v104 = vunpack.c.l.b16 %v26
  %v105 = vunpack.c.l.b16 %v27
  %v106 = vunpack.c.l.b16 %v28
  %v107 = vunpack.c.l.b16 %v29
  %v108 = vunpack.c.l.b16 %v30
  %v109 = vunpack.c.l.b16 %v31
  %v110 = vunpack.c.l.b16 %v32
  %v111 = vunpack.c.l.b16 %v33
  %v112 = vunpack.c.l.b16 %v34
  %v113 = vunpack.c.l.b16 %v35
  %v114 = vunpack.c.l.b16 %v36
  %v115 = vpack.c.b16 %v98, %v97
  %v116 = vpack.c.b16 %v100, %v99
  %v117 = vpack.c.b16 %v102, %v101
  %v118 = vpack.c.b16 %v104, %v103
  %v119 = vpack.c.b16 %v106, %v105
  %v120 = vpack.c.b16 %v108, %v107
  %v121 = vpack.c.b16 %v110, %v109
  %v122 = vpack.c.b16 %v112, %v111
  %v123 = vpack.c.b16 %v114, %v113
  %vm133 = vcmask 130048
  %v135 = vsel %vm133, %v74, 0
  %v138 = vsel %vm133, %v76, 0
  %140 = vmatprep.subr.bf16.mxu0 0
  %141 = vmatpush1.bf16.msra.mxu0 %v122
  %142 = vmatprep.subr.bf16.mxu0 0
  %143 = vmatpush1.bf16.msra.mxu0 %v121
  %144 = vmatprep.subr.bf16.mxu0 0
  %145 = vmatpush1.bf16.msra.mxu0 %v120
  %146 = vmatprep.subr.bf16.mxu0 0
  %147 = vmatpush1.bf16.msra.mxu0 %v119
  %148 = vmatprep.subr.bf16.mxu0 0
  %149 = vmatpush1.bf16.msra.mxu0 %v118
  %150 = vmatprep.subr.bf16.mxu0 0
  %151 = vmatpush1.bf16.msra.mxu0 %v117
  %152 = vmatprep.subr.bf16.mxu0 0
  %153 = vmatpush1.bf16.msra.mxu0 %v116
  %154 = vmatprep.subr.bf16.mxu0 0
  %155 = vmatpush1.bf16.msra.mxu0 %v115
  %156 = vmatprep.subr.bf16.mxu0 0
  %157 = vmatpush2.bf16.msra.mxu0 0
  %158 = vmatprep.subr.bf16.mxu0 0
  %159 = vmatpush2.bf16.msra.mxu0 0
  %160 = vmatprep.subr.bf16.mxu0 0
  %161 = vmatpush2.bf16.msra.mxu0 0
  %162 = vmatprep.subr.bf16.mxu0 0
  %163 = vmatpush2.bf16.msra.mxu0 0
  %164 = vmatprep.subr.bf16.mxu0 0
  %165 = vmatpush2.bf16.msra.mxu0 0
  %166 = vmatprep.subr.bf16.mxu0 0
  %167 = vmatpush2.bf16.msra.mxu0 0
  %168 = vmatprep.subr.bf16.mxu0 0
  %169 = vmatpush2.bf16.msra.mxu0 0
  %170 = vmatprep.subr.bf16.mxu0 0
  %171 = vmatpush2.bf16.msra.mxu0 %v123
  %172 = vmatprep.mubr.bf16.mxu0 %v135
  %173 = vmatmul.mubr.bf16.gmra.mxu0 %v73
  %v174 = vpop.f32.mrf.mxu0
  %v175 = vadd.f32 %v44, %v174
  %v176 = vpop.f32.mrf.mxu0
  %v177 = vpop.f32.mrf.mxu0
  %v178 = vadd.f32 %v49, %v177
  %v179 = vpop.f32.mrf.mxu0
  %180 = vmatprep.mubr.bf16.mxu0 %v138
  %181 = vmatmul.mubr.bf16.gmra.mxu0 %v75
  %v182 = vpop.f32.mrf.mxu0
  %v183 = vadd.f32 %v54, %v182
  %v184 = vpop.f32.mrf.mxu0
  %v185 = vpop.f32.mrf.mxu0
  %v186 = vadd.f32 %v59, %v185
  %v187 = vpop.f32.mrf.mxu0
  %188 = vdwg.mxu0
  %v189 = vmax.f32 %v175, 0.0
  %v190 = vmax.f32 %v178, 0.0
  %v191 = vmax.f32 %v183, 0.0
  %v192 = vmax.f32 %v186, 0.0
  %193 = vst [vmem:[%s3] sm:$0xff] %v189
  %194 = vst [vmem:[%s3 + $0x8] sm:$0xff] %v190
  %195 = vst [vmem:[%s3 + $0x10] sm:$0xff] %v191
  %196 = vst [vmem:[%s3 + $0x18] sm:$0xff] %v192
  // Predicated region
  $region14: #{cycle_generator_forward.8} parent=0 // pred_check
    _
  $region15: #{cycle_generator_forward.8} parent=0 // pred_check_branch
    %198 = sbr.rel (0) target = $region17
  $region16: #{cycle_generator_forward.8} parent=0 // pred_region
    _
  $region17: #{cycle_generator_forward.8} parent=0 // pred_fallthru
    _
  // Predicated region
  $region18: #{cycle_generator_forward.8} parent=0 // pred_check
    _
  $region19: #{cycle_generator_forward.8} parent=0 // pred_check_branch
    %200 = sbr.rel (0) target = $region21
  $region20: #{cycle_generator_forward.8} parent=0 // pred_region
    _
  $region21: #{cycle_generator_forward.8} parent=0 // pred_fallthru
    _

// kernel: cycle_generator_forward.9
$region0: #{cycle_generator_forward.9}
  #allocation0 [shape = 'u32[]', space=smem, size = 0x4, offset = 0x4, fixed_abs, tag = 'smem constant byte address 0x4 - core index']
  #allocation1 [shape = 'u32[144,128]{1,0:T(1,128)}', space=vmem, size = 0x12000, scoped, tag = 'internal scratch']
  %s0 = inlined_call_operand.vmem [shape: bf16[16,72], index: 0, kind: input, shape index: {}]
  %s1 = inlined_call_operand.vmem [shape: bf16[72,512], index: 1, kind: input, shape index: {}]
  %s2 = inlined_call_operand.vmem [shape: f32[16,1], index: 2, kind: input, shape index: {}]
  %s3 = inlined_call_operand.vmem [shape: f32[16,512], index: 3, kind: output, shape index: {}]
  %s4 = sld [smem:[#allocation0]]
  $region102: #{cycle_generator_forward.9} parent=0
    _
  %s6 = ssub.s32 1, %s4
  %s7 = scalar_select 0, %s6, %s4
  $region1: #{cycle_generator_forward.9} parent=0
    #allocation2 [shape = 'u8[73728]{0}', space=vmem, size = 0x12000, scoped, tag = 'input window, operand 1']
    #allocation3 [shape = 'u8[32768]{0}', space=vmem, size = 0x8000, scoped, tag = 'output window, operand 0']
    loop: start=0, step=1, limit=4
    $region2: #{cycle_generator_forward.9} parent=1 // loop_pre_header
      _
    $region3: #{cycle_generator_forward.9} parent=1 // loop_header
      %s9 = sphi 0, %s13
      %p10 = scmp.ge.s32.totalorder %s9, 4
      %s17 = sphi 0, %s17
      %s19 = sphi 0, %s17
      %s20 = sphi 0, %s19
      %s34 = sphi 0, %s20
      %s40 = sphi 0, %s42
      %s43 = sphi 0, %s40
      %s44 = sphi 0, %s43
      %s60 = sphi 0, %s44
      %s64 = sphi 0, %s64
      %s66 = sphi 0, %s64
      %s67 = sphi 0, %s66
      %s81 = sphi 0, %s67
      %s87 = sphi 0, %s89
      %s90 = sphi 0, %s87
      %s91 = sphi 0, %s90
      %s107 = sphi 0, %s91
    $region4: #{cycle_generator_forward.9} parent=1 // loop_header_branch
      %12 = sbr.rel (%p10) target = $region8
    $region5: #{cycle_generator_forward.9} parent=1 // loop_body
      %s14 = ssub.s32 %s9, 1
      %s15 = ssub.s32 %s9, 2
      %s16 = sadd.s32 %s9, 1
      %s18 = sadd.s32 %s17, 1
      %p21 = scmp.eq.s32.totalorder %s9, 1
      %p22 = scmp.ne.s32.totalorder %s17, %s19
      %p23 = scmp.eq.s32.totalorder %s9, 0
      %p24 = por %p22, %p23
      %p25 = scmp.ne.s32.totalorder %s17, %s19
      %p26 = scmp.eq.s32.totalorder %s14, 1
      %p27 = por %p25, %p26
      %p28 = scmp.ne.s32.totalorder %s19, %s20
      %p29 = scmp.eq.s32.totalorder %s14, 0
      %p30 = por %p28, %p29
      %p31 = scmp.ne.s32.totalorder %s19, %s20
      %p32 = scmp.eq.s32.totalorder %s15, 1
      %p33 = por %p31, %p32
      %p35 = scmp.ne.s32.totalorder %s20, %s34
      %p36 = scmp.eq.s32.totalorder %s15, 0
      %p37 = por %p35, %p36
      %s38 = ssub.s32 %s9, %s16
      %p39 = scmp.eq.s32.totalorder %s38, 0
      %s41 = sadd.s32 %s40, 1
      %s42 = scalar_select %p39, %s40, %s41
      %p45 = pneg %p39
      %p46 = scmp.eq.s32.totalorder %s9, 1
      %p47 = por %p45, %p46
      %p48 = scmp.ne.s32.totalorder %s40, %s43
      %p49 = scmp.eq.s32.totalorder %s9, 0
      %p50 = por %p48, %p49
      %p51 = scmp.ne.s32.totalorder %s40, %s43
      %p52 = scmp.eq.s32.totalorder %s14, 1
      %p53 = por %p51, %p52
      %p54 = scmp.ne.s32.totalorder %s43, %s44
      %p55 = scmp.eq.s32.totalorder %s14, 0
      %p56 = por %p54, %p55
      %p57 = scmp.ne.s32.totalorder %s43, %s44
      %p58 = scmp.eq.s32.totalorder %s15, 1
      %p59 = por %p57, %p58
      %p61 = scmp.ne.s32.totalorder %s44, %s60
      %p62 = scmp.eq.s32.totalorder %s15, 0
      %p63 = por %p61, %p62
      %s65 = sadd.s32 %s64, 1
      %p68 = scmp.eq.s32.totalorder %s9, 1
      %p69 = scmp.ne.s32.totalorder %s64, %s66
      %p70 = scmp.eq.s32.totalorder %s9, 0
      %p71 = por %p69, %p70
      %p72 = scmp.ne.s32.totalorder %s64, %s66
      %p73 = scmp.eq.s32.totalorder %s14, 1
      %p74 = por %p72, %p73
      %p75 = scmp.ne.s32.totalorder %s66, %s67
      %p76 = scmp.eq.s32.totalorder %s14, 0
      %p77 = por %p75, %p76
      %p78 = scmp.ne.s32.totalorder %s66, %s67
      %p79 = scmp.eq.s32.totalorder %s15, 1
      %p80 = por %p78, %p79
      %p82 = scmp.ne.s32.totalorder %s67, %s81
      %p83 = scmp.eq.s32.totalorder %s15, 0
      %p84 = por %p82, %p83
      %s85 = ssub.s32 %s9, %s16
      %p86 = scmp.eq.s32.totalorder %s85, 0
      %s88 = sadd.s32 %s87, 1
      %s89 = scalar_select %p86, %s87, %s88
      %p92 = pneg %p86
      %p93 = scmp.eq.s32.totalorder %s9, 1
      %p94 = por %p92, %p93
      %p95 = scmp.ne.s32.totalorder %s87, %s90
      %p96 = scmp.eq.s32.totalorder %s9, 0
      %p97 = por %p95, %p96
      %p98 = scmp.ne.s32.totalorder %s87, %s90
      %p99 = scmp.eq.s32.totalorder %s14, 1
      %p100 = por %p98, %p99
      %p101 = scmp.ne.s32.totalorder %s90, %s91
      %p102 = scmp.eq.s32.totalorder %s14, 0
      %p103 = por %p101, %p102
      %p104 = scmp.ne.s32.totalorder %s90, %s91
      %p105 = scmp.eq.s32.totalorder %s15, 1
      %p106 = por %p104, %p105
      %p108 = scmp.ne.s32.totalorder %s91, %s107
      %p109 = scmp.eq.s32.totalorder %s15, 0
      %p110 = por %p108, %p109
      %p111 = scmp.le.s32.totalorder 1, %s9
      %p112 = scmp.lt.s32.totalorder %s9, 3
      %p113 = pnand %p111, %p112
      %p114 = pneg %p113
      // Predicated region
      $region9: #{cycle_generator_forward.9} parent=5 // pred_check
        _
      $region10: #{cycle_generator_forward.9} parent=5 // pred_check_branch
        %116 = sbr.rel (%p113) target = $region12
      $region11: #{cycle_generator_forward.9} parent=5 // pred_region
        %s117 = ssub.s32 %s9, 1
        // Predicated region
        $region13: #{cycle_generator_forward.9} parent=11 // pred_check
          %p118 = pneg %p30
        $region14: #{cycle_generator_forward.9} parent=11 // pred_check_branch
          %120 = sbr.rel (%p118) target = $region16
        $region15: #{cycle_generator_forward.9} parent=11 // pred_region
          _
        $region16: #{cycle_generator_forward.9} parent=11 // pred_fallthru
          _
        // Predicated region
        $region17: #{cycle_generator_forward.9} parent=11 // pred_check
          %p121 = pneg %p77
        $region18: #{cycle_generator_forward.9} parent=11 // pred_check_branch
          %123 = sbr.rel (%p121) target = $region20
        $region19: #{cycle_generator_forward.9} parent=11 // pred_region
          _
        $region20: #{cycle_generator_forward.9} parent=11 // pred_fallthru
          _
      $region12: #{cycle_generator_forward.9} parent=5 // pred_fallthru
        _
      %p124 = scmp.lt.s32.totalorder %s9, 2
      // Predicated region
      $region21: #{cycle_generator_forward.9} parent=5 // pred_check
        %p125 = pneg %p124
      $region22: #{cycle_generator_forward.9} parent=5 // pred_check_branch
        %127 = sbr.rel (%p125) target = $region24
      $region23: #{cycle_generator_forward.9} parent=5 // pred_region
        // Predicated region
        $region25: #{cycle_generator_forward.9} parent=23 // pred_check
          %p128 = pneg %p50
        $region26: #{cycle_generator_forward.9} parent=23 // pred_check_branch
          %130 = sbr.rel (%p128) target = $region28
        $region27: #{cycle_generator_forward.9} parent=23 // pred_region
          %s131 = sand.u32 %s40, 1
          %s132 = sand.u32 %s40, 1
          %s133 = smul.addr %s132, 72
          %s134 = scalar_lea.vmem [#allocation2], %s133
          %s135 = smul.u32 2, %s9
          %s136 = smul.addr %s135, 4
          %s137 = scalar_lea.vmem %s1, %s136
          // Predicated region
          $region29: #{cycle_generator_forward.9} parent=27 // pred_check
            _
          $region30: #{cycle_generator_forward.9} parent=27 // pred_check_branch
            %139 = sbr.rel (0) target = $region32
          $region31: #{cycle_generator_forward.9} parent=27 // pred_region
            // Predicated region
            $region33: #{cycle_generator_forward.9} parent=31 // pred_check
              _
            $region34: #{cycle_generator_forward.9} parent=31 // pred_check_branch
              %141 = sbr.rel (0) target = $region36
            $region35: #{cycle_generator_forward.9} parent=31 // pred_region
              // Predicated region
              $region48: #{cycle_generator_forward.9} parent=35 // pred_check
                _
              $region49: #{cycle_generator_forward.9} parent=35 // pred_check_branch
                %173 = sbr.rel (0) target = $region51
              $region50: #{cycle_generator_forward.9} parent=35 // pred_region
                loop: start=0, step=1, limit=1
                $region52: #{cycle_generator_forward.9} parent=50 // loop_pre_header
                  _
                $region53: #{cycle_generator_forward.9} parent=50 // loop_header
                  %s175 = sphi 0, %s179
                  %p176 = scmp.ge.s32.totalorder %s175, 1
                  %s180 = sphi %s137, %s137
                  %s181 = sphi %s134, %s134
                $region54: #{cycle_generator_forward.9} parent=50 // loop_header_branch
                  %178 = sbr.rel (%p176) target = $region58
                $region55: #{cycle_generator_forward.9} parent=50 // loop_body
                  %v182 = vld [vmem:[%s180] sm:$0xff]
                  %183 = vst [vmem:[%s181] sm:$0xff] %v182
                  %v184 = vld [vmem:[%s180 + $0x10] sm:$0xff]
                  %185 = vst [vmem:[%s181 + $0x8] sm:$0xff] %v184
                  %v186 = vld [vmem:[%s180 + $0x20] sm:$0xff]
                  %187 = vst [vmem:[%s181 + $0x10] sm:$0xff] %v186
                  %v188 = vld [vmem:[%s180 + $0x30] sm:$0xff]
                  %189 = vst [vmem:[%s181 + $0x18] sm:$0xff] %v188
                  %v190 = vld [vmem:[%s180 + $0x40] sm:$0xff]
                  %191 = vst [vmem:[%s181 + $0x20] sm:$0xff] %v190
                  %v192 = vld [vmem:[%s180 + $0x50] sm:$0xff]
                  %193 = vst [vmem:[%s181 + $0x28] sm:$0xff] %v192
                  %v194 = vld [vmem:[%s180 + $0x60] sm:$0xff]
                  %195 = vst [vmem:[%s181 + $0x30] sm:$0xff] %v194
                  %v196 = vld [vmem:[%s180 + $0x70] sm:$0xff]
                  %197 = vst [vmem:[%s181 + $0x38] sm:$0xff] %v196
                  %v198 = vld [vmem:[%s180 + $0x80] sm:$0xff]
                  %199 = vst [vmem:[%s181 + $0x40] sm:$0xff] %v198
                $region56: #{cycle_generator_forward.9} parent=50 // loop_footer
                  %s179 = sadd.s32 1, %s175
                $region57: #{cycle_generator_forward.9} parent=50 // loop_footer_branch
                  %174 = sbr.rel target = $region53
                $region58: #{cycle_generator_forward.9} parent=50 // loop_exit
                  _
              $region51: #{cycle_generator_forward.9} parent=35 // pred_fallthru
                _
              // Predicated region
              $region59: #{cycle_generator_forward.9} parent=35 // pred_check
                _
              $region60: #{cycle_generator_forward.9} parent=35 // pred_check_branch
                %201 = sbr.rel target = $region62
              $region61: #{cycle_generator_forward.9} parent=35 // pred_region
                _
              $region62: #{cycle_generator_forward.9} parent=35 // pred_fallthru
                _
            $region36: #{cycle_generator_forward.9} parent=31 // pred_fallthru
              _
            // Predicated region
            $region37: #{cycle_generator_forward.9} parent=31 // pred_check
              _
            $region38: #{cycle_generator_forward.9} parent=31 // pred_check_branch
              %143 = sbr.rel target = $region40
            $region39: #{cycle_generator_forward.9} parent=31 // pred_region
              %s145 = ssub.s32 256, 1
              loop: start=0, step=1, limit=1
              $region41: #{cycle_generator_forward.9} parent=39 // loop_pre_header
                _
              $region42: #{cycle_generator_forward.9} parent=39 // loop_header
                %s147 = sphi 0, %s151
                %p148 = scmp.ge.s32.totalorder %s147, 1
                %s152 = sphi %s137, %s137
                %s153 = sphi %s134, %s134
              $region43: #{cycle_generator_forward.9} parent=39 // loop_header_branch
                %150 = sbr.rel (%p148) target = $region47
              $region44: #{cycle_generator_forward.9} parent=39 // loop_body
                %v154 = vld [vmem:[%s152] sm:%s145]
                %155 = vst [vmem:[%s153] sm:%s145] %v154
                %v156 = vld [vmem:[%s152 + $0x10] sm:%s145]
                %157 = vst [vmem:[%s153 + $0x8] sm:%s145] %v156
                %v158 = vld [vmem:[%s152 + $0x20] sm:%s145]
                %159 = vst [vmem:[%s153 + $0x10] sm:%s145] %v158
                %v160 = vld [vmem:[%s152 + $0x30] sm:%s145]
                %161 = vst [vmem:[%s153 + $0x18] sm:%s145] %v160
                %v162 = vld [vmem:[%s152 + $0x40] sm:%s145]
                %163 = vst [vmem:[%s153 + $0x20] sm:%s145] %v162
                %v164 = vld [vmem:[%s152 + $0x50] sm:%s145]
                %165 = vst [vmem:[%s153 + $0x28] sm:%s145] %v164
                %v166 = vld [vmem:[%s152 + $0x60] sm:%s145]
                %167 = vst [vmem:[%s153 + $0x30] sm:%s145] %v166
                %v168 = vld [vmem:[%s152 + $0x70] sm:%s145]
                %169 = vst [vmem:[%s153 + $0x38] sm:%s145] %v168
                %v170 = vld [vmem:[%s152 + $0x80] sm:%s145]
                %171 = vst [vmem:[%s153 + $0x40] sm:%s145] %v170
              $region45: #{cycle_generator_forward.9} parent=39 // loop_footer
                %s151 = sadd.s32 1, %s147
              $region46: #{cycle_generator_forward.9} parent=39 // loop_footer_branch
                %146 = sbr.rel target = $region42
              $region47: #{cycle_generator_forward.9} parent=39 // loop_exit
                _
            $region40: #{cycle_generator_forward.9} parent=31 // pred_fallthru
              _
          $region32: #{cycle_generator_forward.9} parent=27 // pred_fallthru
            _
          %202 = vnop
        $region28: #{cycle_generator_forward.9} parent=23 // pred_fallthru
          _
      $region24: #{cycle_generator_forward.9} parent=5 // pred_fallthru
        _
      %p203 = scmp.le.s32.totalorder 1, %s9
      %p204 = scmp.lt.s32.totalorder %s9, 3
      %p205 = pnand %p203, %p204
      %p206 = pneg %p205
      // Predicated region
      $region63: #{cycle_generator_forward.9} parent=5 // pred_check
        _
      $region64: #{cycle_generator_forward.9} parent=5 // pred_check_branch
        %208 = sbr.rel (%p205) target = $region66
      $region65: #{cycle_generator_forward.9} parent=5 // pred_region
        %s209 = ssub.s32 %s9, 1
        %s210 = sand.u32 %s43, 1
        %s211 = sand.u32 %s43, 1
        %s212 = smul.addr %s211, 72
        %s213 = scalar_lea.vmem [#allocation2], %s212
        // Predicated region
        $region67: #{cycle_generator_forward.9} parent=65 // pred_check
          %p214 = pneg %p56
        $region68: #{cycle_generator_forward.9} parent=65 // pred_check_branch
          %216 = sbr.rel (%p214) target = $region70
        $region69: #{cycle_generator_forward.9} parent=65 // pred_region
          _
        $region70: #{cycle_generator_forward.9} parent=65 // pred_fallthru
          _
        %p217 = pneg %p30
        %p218 = pneg %p27
        %s219 = sand.u32 %s43, 1
        %s220 = sand.u32 %s43, 1
        %s221 = smul.addr %s220, 72
        %s222 = scalar_lea.vmem [#allocation2], %s221
        %p223 = pneg %p56
        %p224 = pneg %p53
        %p225 = pneg %p77
        %p226 = pneg %p74
        %p227 = pneg %p103
        %p228 = pneg %p100
        %s229 = sand.u32 %s90, 1
        %s230 = sand.u32 %s90, 1
        %s231 = smul.addr %s230, 32
        %s232 = scalar_lea.vmem [#allocation3], %s231
        %s233 = smul.u32 2, %s14
        %s234 = smul.u32 2, %s14
        %v236 = vld [vmem:[%s0] sm:$0xf]
        %v237 = vld [vmem:[%s0 + $0x4] sm:$0xf]
        %v238 = vld [vmem:[%s213] sm:$0xff]
        %v239 = vld [vmem:[%s213 + $0x8] sm:$0xff]
        %v240 = vld [vmem:[%s213 + $0x10] sm:$0xff]
        %v241 = vld [vmem:[%s213 + $0x18] sm:$0xff]
        %v242 = vld [vmem:[%s213 + $0x20] sm:$0xff]
        %v243 = vld [vmem:[%s213 + $0x28] sm:$0xff]
        %v244 = vld [vmem:[%s213 + $0x30] sm:$0xff]
        %v245 = vld [vmem:[%s213 + $0x38] sm:$0xff]
        %v246 = vld [vmem:[%s213 + $0x40] sm:$0xff]
        %v247 = vld [vmem:[%s2] sm:$0xff]
        %v248 = vld [vmem:[%s2 + $0x8] sm:$0xff]
        %250 = vset.pattern.permute.xlu0 0
        %251 = vperm.xlu0 %250, %v247
        %v252 = vpop.permute.xlu0 %251
        %255 = vset.pattern.permute.xlu0 0
        %256 = vperm.xlu0 %255, %v248
        %v257 = vpop.permute.xlu0 %256
        %v261 = vunpack.c.l.b16 %v236
        %v262 = vunpack.c.l.b16 %v237
        %v263 = vpack.c.b16 %v262, %v261
        %v273 = vunpack.c.l.b16 %v238
        %v274 = vunpack.c.h.b16 %v238
        %v275 = vunpack.c.l.b16 %v239
        %v276 = vunpack.c.h.b16 %v239
        %v277 = vunpack.c.l.b16 %v240
        %v278 = vunpack.c.h.b16 %v240
        %v279 = vunpack.c.l.b16 %v241
        %v280 = vunpack.c.h.b16 %v241
        %v281 = vunpack.c.l.b16 %v242
        %v282 = vunpack.c.h.b16 %v242
        %v283 = vunpack.c.l.b16 %v243
        %v284 = vunpack.c.h.b16 %v243
        %v285 = vunpack.c.l.b16 %v244
        %v286 = vunpack.c.h.b16 %v244
        %v287 = vunpack.c.l.b16 %v245
        %v288 = vunpack.c.h.b16 %v245
        %v289 = vunpack.c.l.b16 %v246
        %v290 = vunpack.c.h.b16 %v246
        %v291 = vpack.c.b16 %v275, %v273
        %v292 = vpack.c.b16 %v276, %v274
        %v293 = vpack.c.b16 %v279, %v277
        %v294 = vpack.c.b16 %v280, %v278
        %v295 = vpack.c.b16 %v283, %v281
        %v296 = vpack.c.b16 %v284, %v282
        %v297 = vpack.c.b16 %v287, %v285
        %v298 = vpack.c.b16 %v288, %v286
        %v299 = vpack.c.b16 %v289, %v289
        %v300 = vpack.c.b16 %v290, %v290
        %vm309 = vcmask 588800
        %v311 = vsel %vm309, %v263, 0
        %vm313 = vcmask 1043456
        %v315 = vsel %vm313, %v299, 0
        %v318 = vsel %vm313, %v300, 0
        %320 = vmatprep.subr.bf16.mxu0 0
        %321 = vmatpush1.bf16.msra.mxu0 0
        %322 = vmatprep.subr.bf16.mxu0 0
        %323 = vmatpush1.bf16.msra.mxu0 0
        %324 = vmatprep.subr.bf16.mxu0 0
        %325 = vmatpush1.bf16.msra.mxu0 0
        %326 = vmatprep.subr.bf16.mxu0 %v318
        %327 = vmatpush1.bf16.msra.mxu0 %v315
        %328 = vmatprep.subr.bf16.mxu0 %v298
        %329 = vmatpush1.bf16.msra.mxu0 %v297
        %330 = vmatprep.subr.bf16.mxu0 %v296
        %331 = vmatpush1.bf16.msra.mxu0 %v295
        %332 = vmatprep.subr.bf16.mxu0 %v294
        %333 = vmatpush1.bf16.msra.mxu0 %v293
        %334 = vmatprep.subr.bf16.mxu0 %v292
        %335 = vmatpush1.bf16.msra.mxu0 %v291
        %336 = vmatprep.subr.bf16.mxu0 0
        %337 = vmatpush2.bf16.msra.mxu0 0
        %338 = vmatprep.subr.bf16.mxu0 0
        %339 = vmatpush2.bf16.msra.mxu0 0
        %340 = vmatprep.subr.bf16.mxu0 0
        %341 = vmatpush2.bf16.msra.mxu0 0
        %342 = vmatprep.subr.bf16.mxu0 0
        %343 = vmatpush2.bf16.msra.mxu0 0
        %344 = vmatprep.subr.bf16.mxu0 0
        %345 = vmatpush2.bf16.msra.mxu0 0
        %346 = vmatprep.subr.bf16.mxu0 0
        %347 = vmatpush2.bf16.msra.mxu0 0
        %348 = vmatprep.subr.bf16.mxu0 0
        %349 = vmatpush2.bf16.msra.mxu0 0
        %350 = vmatprep.subr.bf16.mxu0 0
        %351 = vmatpush2.bf16.msra.mxu0 0
        %352 = vmatprep.mubr.bf16.mxu0 0
        %353 = vmatmul.mubr.bf16.gmra.mxu0 %v311
        %v354 = vpop.f32.mrf.mxu0
        %v355 = vadd.f32 %v252, %v354
        %v356 = vpop.f32.mrf.mxu0
        %v357 = vadd.f32 %v252, %v356
        %v358 = vpop.f32.mrf.mxu0
        %v359 = vadd.f32 %v257, %v358
        %v360 = vpop.f32.mrf.mxu0
        %v361 = vadd.f32 %v257, %v360
        %362 = vdwg.mxu0
        %v363 = vtanh.pop %v355
        %v364 = vtanh.pop %v357
        %v365 = vtanh.pop %v359
        %v366 = vtanh.pop %v361
        %367 = vst [vmem:[%s232] sm:$0xff] %v363
        %368 = vst [vmem:[%s232 + $0x8] sm:$0xff] %v364
        %369 = vst [vmem:[%s232 + $0x10] sm:$0xff] %v365
        %370 = vst [vmem:[%s232 + $0x18] sm:$0xff] %v366
        %s371 = sand.u32 %s90, 1
        %s372 = sand.u32 %s90, 1
        %s373 = smul.addr %s372, 32
        %s374 = scalar_lea.vmem [#allocation3], %s373
        // Predicated region
        $region71: #{cycle_generator_forward.9} parent=65 // pred_check
          %p375 = pneg %p100
        $region72: #{cycle_generator_forward.9} parent=65 // pred_check_branch
          %377 = sbr.rel (%p375) target = $region74
        $region73: #{cycle_generator_forward.9} parent=65 // pred_region
          %s378 = smul.u32 2, %s14
          %s379 = smul.addr %s378, 8
          %s380 = scalar_lea.vmem %s3, %s379
          // Predicated region
          $region75: #{cycle_generator_forward.9} parent=73 // pred_check
            _
          $region76: #{cycle_generator_forward.9} parent=73 // pred_check_branch
            %382 = sbr.rel (0) target = $region78
          $region77: #{cycle_generator_forward.9} parent=73 // pred_region
            // Predicated region
            $region79: #{cycle_generator_forward.9} parent=77 // pred_check
              _
            $region80: #{cycle_generator_forward.9} parent=77 // pred_check_branch
              %384 = sbr.rel (0) target = $region82
            $region81: #{cycle_generator_forward.9} parent=77 // pred_region
              loop: start=0, step=1, limit=1
              $region83: #{cycle_generator_forward.9} parent=81 // loop_pre_header
                _
              $region84: #{cycle_generator_forward.9} parent=81 // loop_header
                %s386 = sphi 0, %s390
                %p387 = scmp.ge.s32.totalorder %s386, 1
                %s391 = sphi %s374, %s374
                %s392 = sphi %s380, %s380
              $region85: #{cycle_generator_forward.9} parent=81 // loop_header_branch
                %389 = sbr.rel (%p387) target = $region89
              $region86: #{cycle_generator_forward.9} parent=81 // loop_body
                %v393 = vld [vmem:[%s391] sm:$0xff]
                %394 = vst [vmem:[%s392] sm:$0xff] %v393
                %v395 = vld [vmem:[%s391 + $0x8] sm:$0xff]
                %396 = vst [vmem:[%s392 + $0x8] sm:$0xff] %v395
                %v397 = vld [vmem:[%s391 + $0x10] sm:$0xff]
                %398 = vst [vmem:[%s392 + $0x20] sm:$0xff] %v397
                %v399 = vld [vmem:[%s391 + $0x18] sm:$0xff]
                %400 = vst [vmem:[%s392 + $0x28] sm:$0xff] %v399
              $region87: #{cycle_generator_forward.9} parent=81 // loop_footer
                %s390 = sadd.s32 1, %s386
              $region88: #{cycle_generator_forward.9} parent=81 // loop_footer_branch
                %385 = sbr.rel target = $region84
              $region89: #{cycle_generator_forward.9} parent=81 // loop_exit
                _
            $region82: #{cycle_generator_forward.9} parent=77 // pred_fallthru
              _
            // Predicated region
            $region90: #{cycle_generator_forward.9} parent=77 // pred_check
              _
            $region91: #{cycle_generator_forward.9} parent=77 // pred_check_branch
              %402 = sbr.rel target = $region93
            $region92: #{cycle_generator_forward.9} parent=77 // pred_region
              _
            $region93: #{cycle_generator_forward.9} parent=77 // pred_fallthru
              _
          $region78: #{cycle_generator_forward.9} parent=73 // pred_fallthru
            _
          %403 = vnop
        $region74: #{cycle_generator_forward.9} parent=65 // pred_fallthru
          _
      $region66: #{cycle_generator_forward.9} parent=5 // pred_fallthru
        _
      %p404 = scmp.le.s32.totalorder 2, %s9
      // Predicated region
      $region94: #{cycle_generator_forward.9} parent=5 // pred_check
        %p405 = pneg %p404
      $region95: #{cycle_generator_forward.9} parent=5 // pred_check_branch
        %407 = sbr.rel (%p405) target = $region97
      $region96: #{cycle_generator_forward.9} parent=5 // pred_region
        %s408 = ssub.s32 %s9, 2
        // Predicated region
        $region98: #{cycle_generator_forward.9} parent=96 // pred_check
          %p409 = pneg %p106
        $region99: #{cycle_generator_forward.9} parent=96 // pred_check_branch
          %411 = sbr.rel (%p409) target = $region101
        $region100: #{cycle_generator_forward.9} parent=96 // pred_region
          %s412 = sand.u32 %s91, 1
          %s413 = sand.u32 %s91, 1
          %s414 = smul.addr %s413, 32
          %s415 = scalar_lea.vmem [#allocation3], %s414
        $region101: #{cycle_generator_forward.9} parent=96 // pred_fallthru
          _
      $region97: #{cycle_generator_forward.9} parent=5 // pred_fallthru
        _
    $region6: #{cycle_generator_forward.9} parent=1 // loop_footer
      %s13 = sadd.s32 1, %s9
    $region7: #{cycle_generator_forward.9} parent=1 // loop_footer_branch
      %8 = sbr.rel target = $region3
    $region8: #{cycle_generator_forward.9} parent=1 // loop_exit
      _

</llo_original>
